<compile_context>
chip_gen: v6e
topology: v6e:2x2x1
jax: 0.10.0
libtpu: 0.0.40
codegen_flags: <defaults>
</compile_context>

<pallas_src>
import functools
import math

import jax
import jax.numpy as jnp
from jax import lax
from jax.experimental import pallas as pl
from jax.experimental.pallas import tpu as pltpu  # noqa: F401  (TPU-specific knobs)


# ----------------------------- config (small) --------------------------------
BATCH = 2
SEQ = 16
HIDDEN = 64
NUM_HEADS = 4
HEAD_DIM = HIDDEN // NUM_HEADS
INTERMEDIATE = 128
LN_EPS = 1e-6
SCALE = HEAD_DIM ** (-0.5)
# attention_dropout = 0.0 and inference mode -> dropout is identity.


def _gelu_tanh(x):
    # PyTorch nn.functional.gelu(..., approximate='tanh')
    c = math.sqrt(2.0 / math.pi)
    return 0.5 * x * (1.0 + jnp.tanh(c * (x + 0.044715 * x * x * x)))


# --------------------------------- kernel ------------------------------------
def _encoder_layer_kernel(
    x_ref,       # (B*S, D)  f32
    wqkv_ref,    # (D, 3D)   bf16, columns ordered (head, {q,k,v}, d), SCALE folded into q
    wo_ref,      # (D, D)    bf16
    w1_ref,      # (D, I)    bf16
    w2_ref,      # (I, D)    bf16
    c_ref,       # (8, 3D)   f32 packed consts (LN params + all biases)
    o_ref,       # (B*S, D)  f32
    *, batch, seq, num_heads, head_dim, inter,
):
    hidden = num_heads * head_dim
    hd3 = 3 * head_dim

    x = x_ref[...]                                          # (B*S, D) f32
    c = c_ref[...]                                          # (8, 3D)  f32

    # ---- unpack the const slab (static slices; one DMA for all of these) ----
    ln1_g = c[0:1, :hidden]
    ln1_b = c[1:2, :hidden]
    ln2_g = c[2:3, :hidden]
    ln2_b = c[3:4, :hidden]
    bo    = c[4:5, :hidden]
    b2    = c[5:6, :hidden]
    b1    = c[6:7, :inter]
    bqkv  = c[7:8, :3 * hidden]

    # ---- LayerNorm 1 (f32) ----
    mu = jnp.mean(x, axis=-1, keepdims=True)
    var = jnp.mean((x - mu) ** 2, axis=-1, keepdims=True)
    h = (x - mu) * lax.rsqrt(var + LN_EPS) * ln1_g + ln1_b

    # ---- fused QKV projection (bf16 MXU, f32 accum); SCALE pre-folded ----
    qkv = jnp.dot(h.astype(jnp.bfloat16), wqkv_ref[...],
                  preferred_element_type=jnp.float32) + bqkv   # (B*S, 3D) f32

    # Single head reshape/transpose of the fused tensor:
    # (B*S, 3D) -> (B, S, H, 3*hd) -> (B, H, S, 3*hd) -> (B*H, S, 3*hd)
    t = qkv.reshape(batch, seq, num_heads, hd3)
    t = jnp.transpose(t, (0, 2, 1, 3)).reshape(batch * num_heads, seq, hd3)
    t = t.astype(jnp.bfloat16)
    qh = t[:, :, 0:head_dim]                                 # (B*H, S, hd)
    kh = t[:, :, head_dim:2 * head_dim]
    vh = t[:, :, 2 * head_dim:3 * head_dim]

    # ---- attention, batched over all B*H heads at once ----
    s = jnp.einsum("nqd,nkd->nqk", qh, kh,
                   preferred_element_type=jnp.float32)       # (B*H, S, S) f32
    s = s - jnp.max(s, axis=-1, keepdims=True)
    p = jnp.exp(s)
    p = p * pl.reciprocal(jnp.sum(p, axis=-1, keepdims=True), approx=True)
    ctx = jnp.einsum("nqk,nkd->nqd", p.astype(jnp.bfloat16), vh,
                     preferred_element_type=jnp.float32)     # (B*H, S, hd) f32

    # (B*H, S, hd) -> (B*S, D)  (single output layout shuffle)
    ctx = ctx.reshape(batch, num_heads, seq, head_dim)
    ctx = jnp.transpose(ctx, (0, 2, 1, 3)).reshape(batch * seq, hidden)

    attn = jnp.dot(ctx.astype(jnp.bfloat16), wo_ref[...],
                   preferred_element_type=jnp.float32) + bo

    h1 = x + attn                                            # residual 1 (f32)

    # ---- LayerNorm 2 (f32) ----
    mu2 = jnp.mean(h1, axis=-1, keepdims=True)
    var2 = jnp.mean((h1 - mu2) ** 2, axis=-1, keepdims=True)
    h2 = (h1 - mu2) * lax.rsqrt(var2 + LN_EPS) * ln2_g + ln2_b

    # ---- MLP: fc1 -> gelu(tanh) -> fc2 ----
    # TODO(synk): the reference SiglipMLP defines `forwad` (typo) so calling the
    # module would raise; the intended fc1/gelu/fc2 semantics are implemented.
    m = jnp.dot(h2.astype(jnp.bfloat16), w1_ref[...],
                preferred_element_type=jnp.float32) + b1
    m = _gelu_tanh(m)
    m = jnp.dot(m.astype(jnp.bfloat16), w2_ref[...],
                preferred_element_type=jnp.float32) + b2

    o_ref[...] = h1 + m                                      # residual 2


# ---------------------- one-time parameter preparation ------------------------
def prepare_params(params):
    """Fold SCALE, fuse/permute QKV, cast to bf16, pack all small consts. Done once."""
    D, H, hd, I = HIDDEN, NUM_HEADS, HEAD_DIM, INTERMEDIATE
    bf16, f32 = jnp.bfloat16, jnp.float32

    wq = params["wq"] * SCALE          # exact fold (SCALE = 0.25)
    bq = params["bq"] * SCALE

    # Fused QKV weight with columns ordered (head, {q,k,v}, d) so the kernel
    # needs only one head transpose of the fused projection output.
    wqkv = jnp.stack(
        [wq.reshape(D, H, hd),
         params["wk"].reshape(D, H, hd),
         params["wv"].reshape(D, H, hd)], axis=2).reshape(D, 3 * D)
    bqkv = jnp.stack(
        [bq.reshape(1, H, hd),
         params["bk"].reshape(1, H, hd),
         params["bv"].reshape(1, H, hd)], axis=2).reshape(1, 3 * D)

    # Pack every small (1, D)/(1, I)/(1, 3D) parameter into one (8, 3D) slab.
    width = 3 * D
    assert width >= I and width >= D

    def row(v):
        v = v.reshape(1, -1).astype(f32)
        return jnp.pad(v, ((0, 0), (0, width - v.shape[1])))

    consts = jnp.concatenate(
        [row(params["ln1_g"]), row(params["ln1_b"]),
         row(params["ln2_g"]), row(params["ln2_b"]),
         row(params["bo"]), row(params["b2"]),
         row(params["b1"]), row(bqkv)], axis=0)              # (8, 3D) f32

    return {
        "wqkv": wqkv.astype(bf16),
        "wo": params["wo"].astype(bf16),
        "w1": params["w1"].astype(bf16),
        "w2": params["w2"].astype(bf16),
        "consts": consts,
    }


# -------------------------------- wrapper -------------------------------------
@jax.jit
def siglip_encoder_layer(x, prepped):
    B, S, D = x.shape
    assert D == HIDDEN
    M = B * S
    H, hd, I = NUM_HEADS, HEAD_DIM, INTERMEDIATE

    kernel = functools.partial(
        _encoder_layer_kernel,
        batch=B, seq=S, num_heads=H, head_dim=hd, inter=I)

    flops = (2 * M * D * 3 * D            # fused qkv
             + 4 * B * H * S * S * hd     # scores + pv
             + 2 * M * D * D              # out proj
             + 4 * M * D * I)             # fc1 + fc2
    transcendentals = B * H * S * S + M * I          # exp + tanh (dominant)
    bytes_accessed = (4 * M * D * 2                  # x in + out (f32)
                      + 2 * (3 * D * D + D * D + 2 * D * I)  # bf16 weights
                      + 4 * 8 * 3 * D)               # const slab

    # Single invocation, no grid: every operand is a full-array VMEM block, so
    # there is no per-step pipeline overhead and no weight double-buffering.
    out2 = pl.pallas_call(
        kernel,
        out_shape=jax.ShapeDtypeStruct((M, D), jnp.float32),
        cost_estimate=pl.CostEstimate(
            flops=flops, transcendentals=transcendentals,
            bytes_accessed=bytes_accessed),
    )(
        x.reshape(M, D),
        prepped["wqkv"], prepped["wo"], prepped["w1"], prepped["w2"],
        prepped["consts"],
    )
    return out2.reshape(B, S, D)


# ------------------------- pure-JAX reference (check) -------------------------
def reference_encoder_layer(x, p):
    def ln(h, g, b):
        mu = jnp.mean(h, axis=-1, keepdims=True)
        var = jnp.mean((h - mu) ** 2, axis=-1, keepdims=True)
        return (h - mu) / jnp.sqrt(var + LN_EPS) * g[0] + b[0]

    res = x
    h = ln(x, p["ln1_g"], p["ln1_b"])
    q = h @ p["wq"] + p["bq"][0]
    k = h @ p["wk"] + p["bk"][0]
    v = h @ p["wv"] + p["bv"][0]
    B, S, D = x.shape
    q = q.reshape(B, S, NUM_HEADS, HEAD_DIM).transpose(0, 2, 1, 3)
    k = k.reshape(B, S, NUM_HEADS, HEAD_DIM).transpose(0, 2, 1, 3)
    v = v.reshape(B, S, NUM_HEADS, HEAD_DIM).transpose(0, 2, 1, 3)
    w = jnp.einsum("bhqd,bhkd->bhqk", q, k) * SCALE
    w = jax.nn.softmax(w, axis=-1)
    a = jnp.einsum("bhqk,bhkd->bhqd", w, v)
    a = a.transpose(0, 2, 1, 3).reshape(B, S, D)
    a = a @ p["wo"] + p["bo"][0]
    h = res + a
    res = h
    h2 = ln(h, p["ln2_g"], p["ln2_b"])
    m = _gelu_tanh(h2 @ p["w1"] + p["b1"][0])
    m = m @ p["w2"] + p["b2"][0]
    return res + m


# --------------------------------- main ---------------------------------------
def make_params(key):
    ks = jax.random.split(key, 8)
    std = 0.02
    return {
        "ln1_g": jnp.ones((1, HIDDEN), jnp.float32),
        "ln1_b": jnp.zeros((1, HIDDEN), jnp.float32),
        "ln2_g": jnp.ones((1, HIDDEN), jnp.float32),
        "ln2_b": jnp.zeros((1, HIDDEN), jnp.float32),
        # weights stored as (in, out)  (== PyTorch Linear.weight.T)
        "wq": std * jax.random.normal(ks[0], (HIDDEN, HIDDEN), jnp.float32),
        "wk": std * jax.random.normal(ks[1], (HIDDEN, HIDDEN), jnp.float32),
        "wv": std * jax.random.normal(ks[2], (HIDDEN, HIDDEN), jnp.float32),
        "wo": std * jax.random.normal(ks[3], (HIDDEN, HIDDEN), jnp.float32),
        "w1": std * jax.random.normal(ks[4], (HIDDEN, INTERMEDIATE), jnp.float32),
        "w2": std * jax.random.normal(ks[5], (INTERMEDIATE, HIDDEN), jnp.float32),
        "bq": 0.01 * jax.random.normal(ks[6], (1, HIDDEN), jnp.float32),
        "bk": jnp.zeros((1, HIDDEN), jnp.float32),
        "bv": jnp.zeros((1, HIDDEN), jnp.float32),
        "bo": jnp.zeros((1, HIDDEN), jnp.float32),
        "b1": 0.01 * jax.random.normal(ks[7], (1, INTERMEDIATE), jnp.float32),
        "b2": jnp.zeros((1, HIDDEN), jnp.float32),
    }


if __name__ == "__main__":
    key = jax.random.PRNGKey(0)
    kx, kp = jax.random.split(key)
    x = jax.random.normal(kx, (BATCH, SEQ, HIDDEN), jnp.float32)
    params = make_params(kp)

    prepped = prepare_params(params)          # one-time weight prep (no per-call cost)

    out = siglip_encoder_layer(x, prepped)
    out = jax.block_until_ready(out)

    ref = reference_encoder_layer(x, params)
    assert out.shape == (BATCH, SEQ, HIDDEN)
    # bf16 matmuls with f32 accumulation -> loosened tolerance vs. the f32 ref.
    assert jnp.allclose(out, ref, atol=1e-2, rtol=1e-2), (
        float(jnp.max(jnp.abs(out - ref))))

    print("KERNEL_OK")
</pallas_src>

<mosaic_0001>
module attributes {stable_mosaic.version = 11 : i64} {
  func.func @_encoder_layer_kernel(%arg0: memref<32x64xf32, #tpu.memory_space<vmem>>, %arg1: memref<64x192xbf16, #tpu.memory_space<vmem>>, %arg2: memref<64x64xbf16, #tpu.memory_space<vmem>>, %arg3: memref<64x128xbf16, #tpu.memory_space<vmem>>, %arg4: memref<128x64xbf16, #tpu.memory_space<vmem>>, %arg5: memref<8x192xf32, #tpu.memory_space<vmem>>, %arg6: memref<32x64xf32, #tpu.memory_space<vmem>>) attributes {dimension_semantics = [], scalar_prefetch = 0 : i64, scratch_operands = 0 : i64, tpu.core_type = #tpu.core_type<tc>} {
    %c0 = arith.constant 0 : index
    %c0_0 = arith.constant 0 : index
    %0 = vector.load %arg0[%c0, %c0_0] : memref<32x64xf32, #tpu.memory_space<vmem>>, vector<32x64xf32>
    %c0_1 = arith.constant 0 : index
    %c0_2 = arith.constant 0 : index
    %1 = vector.load %arg5[%c0_1, %c0_2] : memref<8x192xf32, #tpu.memory_space<vmem>>, vector<8x192xf32>
    %2 = vector.extract_strided_slice %1 {offsets = [0, 0], sizes = [1, 64], strides = [1, 1]} : vector<8x192xf32> to vector<1x64xf32>
    %3 = vector.extract_strided_slice %1 {offsets = [1, 0], sizes = [1, 64], strides = [1, 1]} : vector<8x192xf32> to vector<1x64xf32>
    %4 = vector.extract_strided_slice %1 {offsets = [2, 0], sizes = [1, 64], strides = [1, 1]} : vector<8x192xf32> to vector<1x64xf32>
    %5 = vector.extract_strided_slice %1 {offsets = [3, 0], sizes = [1, 64], strides = [1, 1]} : vector<8x192xf32> to vector<1x64xf32>
    %6 = vector.extract_strided_slice %1 {offsets = [4, 0], sizes = [1, 64], strides = [1, 1]} : vector<8x192xf32> to vector<1x64xf32>
    %7 = vector.extract_strided_slice %1 {offsets = [5, 0], sizes = [1, 64], strides = [1, 1]} : vector<8x192xf32> to vector<1x64xf32>
    %8 = vector.extract_strided_slice %1 {offsets = [6, 0], sizes = [1, 128], strides = [1, 1]} : vector<8x192xf32> to vector<1x128xf32>
    %9 = vector.extract_strided_slice %1 {offsets = [7, 0], sizes = [1, 192], strides = [1, 1]} : vector<8x192xf32> to vector<1x192xf32>
    %cst = arith.constant dense<0.000000e+00> : vector<32xf32>
    %10 = vector.multi_reduction <add>, %0, %cst [1] : vector<32x64xf32> to vector<32xf32>
    %11 = vector.shape_cast %10 : vector<32xf32> to vector<32x1xf32>
    %cst_3 = arith.constant 6.400000e+01 : f32
    %12 = vector.broadcast %cst_3 : f32 to vector<32x1xf32>
    %13 = arith.divf %11, %12 : vector<32x1xf32>
    %14 = vector.broadcast %13 : vector<32x1xf32> to vector<32x64xf32>
    %15 = arith.subf %0, %14 : vector<32x64xf32>
    %16 = arith.mulf %15, %15 : vector<32x64xf32>
    %cst_4 = arith.constant dense<0.000000e+00> : vector<32xf32>
    %17 = vector.multi_reduction <add>, %16, %cst_4 [1] : vector<32x64xf32> to vector<32xf32>
    %18 = vector.shape_cast %17 : vector<32xf32> to vector<32x1xf32>
    %cst_5 = arith.constant 6.400000e+01 : f32
    %19 = vector.broadcast %cst_5 : f32 to vector<32x1xf32>
    %20 = arith.divf %18, %19 : vector<32x1xf32>
    %21 = vector.broadcast %13 : vector<32x1xf32> to vector<32x64xf32>
    %22 = arith.subf %0, %21 : vector<32x64xf32>
    %cst_6 = arith.constant 9.99999997E-7 : f32
    %23 = vector.broadcast %cst_6 : f32 to vector<32x1xf32>
    %24 = arith.addf %20, %23 : vector<32x1xf32>
    %25 = math.rsqrt %24 : vector<32x1xf32>
    %26 = vector.broadcast %25 : vector<32x1xf32> to vector<32x64xf32>
    %27 = arith.mulf %22, %26 : vector<32x64xf32>
    %28 = vector.broadcast %2 : vector<1x64xf32> to vector<32x64xf32>
    %29 = arith.mulf %27, %28 : vector<32x64xf32>
    %30 = vector.broadcast %3 : vector<1x64xf32> to vector<32x64xf32>
    %31 = arith.addf %29, %30 : vector<32x64xf32>
    %32 = arith.truncf %31 : vector<32x64xf32> to vector<32x64xbf16>
    %c0_7 = arith.constant 0 : index
    %c0_8 = arith.constant 0 : index
    %33 = vector.load %arg1[%c0_7, %c0_8] : memref<64x192xbf16, #tpu.memory_space<vmem>>, vector<64x192xbf16>
    %cst_9 = arith.constant dense<0.000000e+00> : vector<32x192xf32>
    %34 = tpu.matmul %32, %33, %cst_9 {dimension_numbers = #tpu.dot_dimension_numbers<[1], [0], [0], [1], [0, 0, 1, 1], [], []>} : vector<32x64xbf16>, vector<64x192xbf16>, vector<32x192xf32> -> vector<32x192xf32>
    %35 = vector.broadcast %9 : vector<1x192xf32> to vector<32x192xf32>
    %36 = arith.addf %34, %35 : vector<32x192xf32>
    %37 = vector.shape_cast %36 : vector<32x192xf32> to vector<2x16x4x48xf32>
    %38 = tpu.transpose %37, [0, 2, 1, 3] : vector<2x16x4x48xf32> -> vector<2x4x16x48xf32>
    %39 = vector.shape_cast %38 : vector<2x4x16x48xf32> to vector<8x16x48xf32>
    %40 = arith.truncf %39 : vector<8x16x48xf32> to vector<8x16x48xbf16>
    %41 = vector.extract_strided_slice %40 {offsets = [0, 0, 0], sizes = [8, 16, 16], strides = [1, 1, 1]} : vector<8x16x48xbf16> to vector<8x16x16xbf16>
    %42 = vector.extract_strided_slice %40 {offsets = [0, 0, 16], sizes = [8, 16, 16], strides = [1, 1, 1]} : vector<8x16x48xbf16> to vector<8x16x16xbf16>
    %43 = vector.extract_strided_slice %40 {offsets = [0, 0, 32], sizes = [8, 16, 16], strides = [1, 1, 1]} : vector<8x16x48xbf16> to vector<8x16x16xbf16>
    "tpu.trace_start"() <{level = 10 : i32, message = "nqd,nkd->nqk"}> : () -> ()
    %cst_10 = arith.constant dense<0.000000e+00> : vector<8x16x16xf32>
    %44 = tpu.matmul %41, %42, %cst_10 {dimension_numbers = #tpu.dot_dimension_numbers<[2], [2], [1], [1], [0, 0, 0, 1, 1, 1], [0], [0]>} : vector<8x16x16xbf16>, vector<8x16x16xbf16>, vector<8x16x16xf32> -> vector<8x16x16xf32>
    "tpu.trace_stop"() : () -> ()
    %cst_11 = arith.constant dense<0xFF800000> : vector<8x16xf32>
    %45 = vector.multi_reduction <maximumf>, %44, %cst_11 [2] : vector<8x16x16xf32> to vector<8x16xf32>
    %46 = vector.shape_cast %45 : vector<8x16xf32> to vector<8x16x1xf32>
    %47 = vector.broadcast %46 : vector<8x16x1xf32> to vector<8x16x16xf32>
    %48 = arith.subf %44, %47 : vector<8x16x16xf32>
    %49 = math.exp %48 : vector<8x16x16xf32>
    %cst_12 = arith.constant dense<0.000000e+00> : vector<8x16xf32>
    %50 = vector.multi_reduction <add>, %49, %cst_12 [2] : vector<8x16x16xf32> to vector<8x16xf32>
    %51 = vector.shape_cast %50 : vector<8x16xf32> to vector<8x16x1xf32>
    %52 = tpu.reciprocal %51 {approx = true} : vector<8x16x1xf32> -> vector<8x16x1xf32>
    %53 = vector.broadcast %52 : vector<8x16x1xf32> to vector<8x16x16xf32>
    %54 = arith.mulf %49, %53 : vector<8x16x16xf32>
    %55 = arith.truncf %54 : vector<8x16x16xf32> to vector<8x16x16xbf16>
    "tpu.trace_start"() <{level = 10 : i32, message = "nqk,nkd->nqd"}> : () -> ()
    %cst_13 = arith.constant dense<0.000000e+00> : vector<8x16x16xf32>
    %56 = tpu.matmul %55, %43, %cst_13 {dimension_numbers = #tpu.dot_dimension_numbers<[2], [1], [1], [2], [0, 0, 0, 1, 1, 2], [0], [0]>} : vector<8x16x16xbf16>, vector<8x16x16xbf16>, vector<8x16x16xf32> -> vector<8x16x16xf32>
    "tpu.trace_stop"() : () -> ()
    %57 = vector.shape_cast %56 : vector<8x16x16xf32> to vector<2x4x16x16xf32>
    %58 = tpu.transpose %57, [0, 2, 1, 3] : vector<2x4x16x16xf32> -> vector<2x16x4x16xf32>
    %59 = vector.shape_cast %58 : vector<2x16x4x16xf32> to vector<32x64xf32>
    %60 = arith.truncf %59 : vector<32x64xf32> to vector<32x64xbf16>
    %c0_14 = arith.constant 0 : index
    %c0_15 = arith.constant 0 : index
    %61 = vector.load %arg2[%c0_14, %c0_15] : memref<64x64xbf16, #tpu.memory_space<vmem>>, vector<64x64xbf16>
    %cst_16 = arith.constant dense<0.000000e+00> : vector<32x64xf32>
    %62 = tpu.matmul %60, %61, %cst_16 {dimension_numbers = #tpu.dot_dimension_numbers<[1], [0], [0], [1], [0, 0, 1, 1], [], []>} : vector<32x64xbf16>, vector<64x64xbf16>, vector<32x64xf32> -> vector<32x64xf32>
    %63 = vector.broadcast %6 : vector<1x64xf32> to vector<32x64xf32>
    %64 = arith.addf %62, %63 : vector<32x64xf32>
    %65 = arith.addf %0, %64 : vector<32x64xf32>
    %cst_17 = arith.constant dense<0.000000e+00> : vector<32xf32>
    %66 = vector.multi_reduction <add>, %65, %cst_17 [1] : vector<32x64xf32> to vector<32xf32>
    %67 = vector.shape_cast %66 : vector<32xf32> to vector<32x1xf32>
    %cst_18 = arith.constant 6.400000e+01 : f32
    %68 = vector.broadcast %cst_18 : f32 to vector<32x1xf32>
    %69 = arith.divf %67, %68 : vector<32x1xf32>
    %70 = vector.broadcast %69 : vector<32x1xf32> to vector<32x64xf32>
    %71 = arith.subf %65, %70 : vector<32x64xf32>
    %72 = arith.mulf %71, %71 : vector<32x64xf32>
    %cst_19 = arith.constant dense<0.000000e+00> : vector<32xf32>
    %73 = vector.multi_reduction <add>, %72, %cst_19 [1] : vector<32x64xf32> to vector<32xf32>
    %74 = vector.shape_cast %73 : vector<32xf32> to vector<32x1xf32>
    %cst_20 = arith.constant 6.400000e+01 : f32
    %75 = vector.broadcast %cst_20 : f32 to vector<32x1xf32>
    %76 = arith.divf %74, %75 : vector<32x1xf32>
    %77 = vector.broadcast %69 : vector<32x1xf32> to vector<32x64xf32>
    %78 = arith.subf %65, %77 : vector<32x64xf32>
    %cst_21 = arith.constant 9.99999997E-7 : f32
    %79 = vector.broadcast %cst_21 : f32 to vector<32x1xf32>
    %80 = arith.addf %76, %79 : vector<32x1xf32>
    %81 = math.rsqrt %80 : vector<32x1xf32>
    %82 = vector.broadcast %81 : vector<32x1xf32> to vector<32x64xf32>
    %83 = arith.mulf %78, %82 : vector<32x64xf32>
    %84 = vector.broadcast %4 : vector<1x64xf32> to vector<32x64xf32>
    %85 = arith.mulf %83, %84 : vector<32x64xf32>
    %86 = vector.broadcast %5 : vector<1x64xf32> to vector<32x64xf32>
    %87 = arith.addf %85, %86 : vector<32x64xf32>
    %88 = arith.truncf %87 : vector<32x64xf32> to vector<32x64xbf16>
    %c0_22 = arith.constant 0 : index
    %c0_23 = arith.constant 0 : index
    %89 = vector.load %arg3[%c0_22, %c0_23] : memref<64x128xbf16, #tpu.memory_space<vmem>>, vector<64x128xbf16>
    %cst_24 = arith.constant dense<0.000000e+00> : vector<32x128xf32>
    %90 = tpu.matmul %88, %89, %cst_24 {dimension_numbers = #tpu.dot_dimension_numbers<[1], [0], [0], [1], [0, 0, 1, 1], [], []>} : vector<32x64xbf16>, vector<64x128xbf16>, vector<32x128xf32> -> vector<32x128xf32>
    %91 = vector.broadcast %8 : vector<1x128xf32> to vector<32x128xf32>
    %92 = arith.addf %90, %91 : vector<32x128xf32>
    %cst_25 = arith.constant 5.000000e-01 : f32
    %93 = vector.broadcast %cst_25 : f32 to vector<32x128xf32>
    %94 = arith.mulf %93, %92 : vector<32x128xf32>
    %cst_26 = arith.constant 4.471500e-02 : f32
    %95 = vector.broadcast %cst_26 : f32 to vector<32x128xf32>
    %96 = arith.mulf %95, %92 : vector<32x128xf32>
    %97 = arith.mulf %96, %92 : vector<32x128xf32>
    %98 = arith.mulf %97, %92 : vector<32x128xf32>
    %99 = arith.addf %92, %98 : vector<32x128xf32>
    %cst_27 = arith.constant 0.797884583 : f32
    %100 = vector.broadcast %cst_27 : f32 to vector<32x128xf32>
    %101 = arith.mulf %100, %99 : vector<32x128xf32>
    %102 = math.tanh %101 : vector<32x128xf32>
    %cst_28 = arith.constant 1.000000e+00 : f32
    %103 = vector.broadcast %cst_28 : f32 to vector<32x128xf32>
    %104 = arith.addf %103, %102 : vector<32x128xf32>
    %105 = arith.mulf %94, %104 : vector<32x128xf32>
    %106 = arith.truncf %105 : vector<32x128xf32> to vector<32x128xbf16>
    %c0_29 = arith.constant 0 : index
    %c0_30 = arith.constant 0 : index
    %107 = vector.load %arg4[%c0_29, %c0_30] : memref<128x64xbf16, #tpu.memory_space<vmem>>, vector<128x64xbf16>
    %cst_31 = arith.constant dense<0.000000e+00> : vector<32x64xf32>
    %108 = tpu.matmul %106, %107, %cst_31 {dimension_numbers = #tpu.dot_dimension_numbers<[1], [0], [0], [1], [0, 0, 1, 1], [], []>} : vector<32x128xbf16>, vector<128x64xbf16>, vector<32x64xf32> -> vector<32x64xf32>
    %109 = vector.broadcast %7 : vector<1x64xf32> to vector<32x64xf32>
    %110 = arith.addf %108, %109 : vector<32x64xf32>
    %111 = arith.addf %65, %110 : vector<32x64xf32>
    %c0_32 = arith.constant 0 : index
    %c0_33 = arith.constant 0 : index
    %112 = vector.load %arg6[%c0_32, %c0_33] : memref<32x64xf32, #tpu.memory_space<vmem>>, vector<32x64xf32>
    tpu.vector_store %arg6[%c0_32, %c0_33], %111 {strides = array<i32>} : memref<32x64xf32, #tpu.memory_space<vmem>>, vector<32x64xf32>,
    return
  }
}

</mosaic_0001>

<llo_original>
// kernel: siglip_encoder_layer.1
$region0: #{siglip_encoder_layer.1}
  #allocation0 [shape = 'u32[]', space=smem, size = 0x4, offset = 0x4, fixed_abs, tag = 'smem constant byte address 0x4 - core index']
  #allocation1 [shape = 'u32[144,128]{1,0:T(1,128)}', space=vmem, size = 0x12000, scoped, tag = 'internal scratch']
  %s0 = inlined_call_operand.vmem [shape: f32[32,64], index: 0, kind: input, shape index: {}]
  %s1 = inlined_call_operand.vmem [shape: bf16[64,192], index: 1, kind: input, shape index: {}]
  %s2 = inlined_call_operand.hbm [shape: bf16[64,64], index: 2, kind: input, shape index: {}]
  %s3 = inlined_call_operand.hbm [shape: bf16[64,128], index: 3, kind: input, shape index: {}]
  %s4 = inlined_call_operand.vmem [shape: bf16[128,64], index: 4, kind: input, shape index: {}]
  %s5 = inlined_call_operand.hbm [shape: f32[8,192], index: 5, kind: input, shape index: {}]
  %s6 = inlined_call_operand.hbm [shape: f32[32,64], index: 6, kind: output, shape index: {}]
  %s7 = sld [smem:[#allocation0]]
  $region46: #{siglip_encoder_layer.1} parent=0
    _
  %s9 = ssub.s32 1, %s7
  %s10 = scalar_select 0, %s9, %s7
  $region1: #{siglip_encoder_layer.1} parent=0
    #allocation2 [shape = 'u8[16384]{0}', space=vmem, size = 0x4000, scoped, tag = 'input window, operand 2, single buffered']
    #allocation3 [shape = 's32[1]{0}', space=sflag, size = 0x4, scoped, tag = 'scoped memory for siglip_encoder_layer.1']
    #allocation4 [shape = 's32[1]{0}', space=sflag, size = 0x4, scoped, tag = 'scoped memory for siglip_encoder_layer.1']
    #allocation5 [shape = 'u8[16384]{0}', space=vmem, size = 0x4000, scoped, tag = 'input window, operand 3, single buffered']
    #allocation6 [shape = 's32[1]{0}', space=sflag, size = 0x4, scoped, tag = 'scoped memory for siglip_encoder_layer.1']
    #allocation7 [shape = 'u8[8192]{0}', space=vmem, size = 0x2000, scoped, tag = 'input window, operand 5, single buffered']
    #allocation8 [shape = 'u8[16384]{0}', space=vmem, size = 0x4000, scoped, tag = 'output window, operand 0, single buffered']
    %11 = vsyncpa [#allocation3], 0
    %12 = vsyncpa [#allocation6], 0
    %13 = vsyncpa [#allocation4], 0
    // Predicated region
    $region2: #{siglip_encoder_layer.1} parent=1 // pred_check
      _
    $region3: #{siglip_encoder_layer.1} parent=1 // pred_check_branch
      %15 = sbr.rel (0) target = $region5
    $region4: #{siglip_encoder_layer.1} parent=1 // pred_region
      _
    $region5: #{siglip_encoder_layer.1} parent=1 // pred_fallthru
      _
    // Predicated region
    $region6: #{siglip_encoder_layer.1} parent=1 // pred_check
      _
    $region7: #{siglip_encoder_layer.1} parent=1 // pred_check_branch
      %17 = sbr.rel (0) target = $region9
    $region8: #{siglip_encoder_layer.1} parent=1 // pred_region
      _
    $region9: #{siglip_encoder_layer.1} parent=1 // pred_fallthru
      _
    // Predicated region
    $region10: #{siglip_encoder_layer.1} parent=1 // pred_check
      _
    $region11: #{siglip_encoder_layer.1} parent=1 // pred_check_branch
      %19 = sbr.rel (0) target = $region13
    $region12: #{siglip_encoder_layer.1} parent=1 // pred_region
      %s21 = ssub.s32 512, 512
      %22 = vsyncadd [#allocation3], %s21
      %s23 = sshll.u32 [#allocation2], 4
      %s24 = int_to_ptr.vmem [resolvable:$true] %s23
      %29 = dma.hbm_to_vmem [thread:$0]  %s2, 512, %s24, [#allocation3], 64, 64, 4
    $region13: #{siglip_encoder_layer.1} parent=1 // pred_fallthru
      _
    // Predicated region
    $region14: #{siglip_encoder_layer.1} parent=1 // pred_check
      _
    $region15: #{siglip_encoder_layer.1} parent=1 // pred_check_branch
      %31 = sbr.rel (0) target = $region17
    $region16: #{siglip_encoder_layer.1} parent=1 // pred_region
      %s33 = ssub.s32 512, 512
      %34 = vsyncadd [#allocation6], %s33
      %s35 = sshll.u32 [#allocation5], 4
      %s36 = int_to_ptr.vmem [resolvable:$true] %s35
      %41 = dma.hbm_to_vmem [thread:$0]  %s3, 512, %s36, [#allocation6], 64, 64, 4
    $region17: #{siglip_encoder_layer.1} parent=1 // pred_fallthru
      _
    // Predicated region
    $region18: #{siglip_encoder_layer.1} parent=1 // pred_check
      _
    $region19: #{siglip_encoder_layer.1} parent=1 // pred_check_branch
      %43 = sbr.rel (0) target = $region21
    $region20: #{siglip_encoder_layer.1} parent=1 // pred_region
      _
    $region21: #{siglip_encoder_layer.1} parent=1 // pred_fallthru
      _
    // Predicated region
    $region22: #{siglip_encoder_layer.1} parent=1 // pred_check
      _
    $region23: #{siglip_encoder_layer.1} parent=1 // pred_check_branch
      %45 = sbr.rel (0) target = $region25
    $region24: #{siglip_encoder_layer.1} parent=1 // pred_region
      %s47 = ssub.s32 256, 256
      %48 = vsyncadd [#allocation6], %s47
      %s50 = sshll.u32 [#allocation7], 4
      %s51 = int_to_ptr.vmem [resolvable:$true] %s50
      %53 = dma.hbm_to_vmem [thread:$0]  %s5, 256, %s51, [#allocation6]
    $region25: #{siglip_encoder_layer.1} parent=1 // pred_fallthru
      _
    // Predicated region
    $region26: #{siglip_encoder_layer.1} parent=1 // pred_check
      _
    $region27: #{siglip_encoder_layer.1} parent=1 // pred_check_branch
      %55 = sbr.rel (0) target = $region29
    $region28: #{siglip_encoder_layer.1} parent=1 // pred_region
      %56 = dma.done [#allocation3], 512
    $region29: #{siglip_encoder_layer.1} parent=1 // pred_fallthru
      _
    // Predicated region
    $region30: #{siglip_encoder_layer.1} parent=1 // pred_check
      _
    $region31: #{siglip_encoder_layer.1} parent=1 // pred_check_branch
      %58 = sbr.rel (0) target = $region33
    $region32: #{siglip_encoder_layer.1} parent=1 // pred_region
      %59 = dma.done [#allocation6], 512
    $region33: #{siglip_encoder_layer.1} parent=1 // pred_fallthru
      _
    // Predicated region
    $region34: #{siglip_encoder_layer.1} parent=1 // pred_check
      _
    $region35: #{siglip_encoder_layer.1} parent=1 // pred_check_branch
      %61 = sbr.rel (0) target = $region37
    $region36: #{siglip_encoder_layer.1} parent=1 // pred_region
      %62 = dma.done [#allocation6], 256
    $region37: #{siglip_encoder_layer.1} parent=1 // pred_fallthru
      _
    %v64 = vld [vmem:[%s0] sm:$0xff]
    %v65 = vld [vmem:[%s0 + $0x8] sm:$0xff]
    %v66 = vld [vmem:[%s0 + $0x10] sm:$0xff]
    %v67 = vld [vmem:[%s0 + $0x18] sm:$0xff]
    %v68 = vld [vmem:[#allocation7] sm:$0xff]
    %v69 = vld [vmem:[#allocation7 + $0x8] sm:$0xff]
    %vm70 = vcmask 523264
    %v71 = vsel %vm70, %v64, 0.0
    %72 = vadd.xlane.f32.xlu0 %v71
    %v73 = vpop.xlane.xlu0 %72
    %v74 = vsel %vm70, %v65, 0.0
    %75 = vadd.xlane.f32.xlu0 %v74
    %v76 = vpop.xlane.xlu0 %75
    %v77 = vsel %vm70, %v66, 0.0
    %78 = vadd.xlane.f32.xlu0 %v77
    %v79 = vpop.xlane.xlu0 %78
    %v80 = vsel %vm70, %v67, 0.0
    %81 = vadd.xlane.f32.xlu0 %v80
    %v82 = vpop.xlane.xlu0 %81
    %v83 = vrcp.pop 64.0
    %v84 = vmul.f32 %v73, %v83
    %v85 = vmul.f32 %v76, %v83
    %v86 = vmul.f32 %v79, %v83
    %v87 = vmul.f32 %v82, %v83
    %v88 = vsub.f32 %v64, %v84
    %v89 = vsub.f32 %v65, %v85
    %v90 = vsub.f32 %v66, %v86
    %v91 = vsub.f32 %v67, %v87
    %v92 = vmul.f32 %v88, %v88
    %v93 = vmul.f32 %v89, %v89
    %v94 = vmul.f32 %v90, %v90
    %v95 = vmul.f32 %v91, %v91
    %v96 = vsel %vm70, %v92, 0.0
    %97 = vadd.xlane.f32.xlu0 %v96
    %v98 = vpop.xlane.xlu0 %97
    %v99 = vsel %vm70, %v93, 0.0
    %100 = vadd.xlane.f32.xlu0 %v99
    %v101 = vpop.xlane.xlu0 %100
    %v102 = vsel %vm70, %v94, 0.0
    %103 = vadd.xlane.f32.xlu0 %v102
    %v104 = vpop.xlane.xlu0 %103
    %v105 = vsel %vm70, %v95, 0.0
    %106 = vadd.xlane.f32.xlu0 %v105
    %v107 = vpop.xlane.xlu0 %106
    %v108 = vmul.f32 %v98, %v83
    %v109 = vmul.f32 %v101, %v83
    %v110 = vmul.f32 %v104, %v83
    %v111 = vmul.f32 %v107, %v83
    %v112 = vadd.f32 %v108, 1e-06
    %v113 = vadd.f32 %v109, 1e-06
    %v114 = vadd.f32 %v110, 1e-06
    %v115 = vadd.f32 %v111, 1e-06
    %v116 = vrsqrt.pop %v112
    %v117 = vrsqrt.pop %v113
    %v118 = vrsqrt.pop %v114
    %v119 = vrsqrt.pop %v115
    %v120 = vmul.f32 %v88, %v116
    %v121 = vmul.f32 %v89, %v117
    %v122 = vmul.f32 %v90, %v118
    %v123 = vmul.f32 %v91, %v119
    %v124 = vlaneseq
    %v125 = vshrl.u32 %v124, 7
    %v126 = vsub.s32 0, %v125
    %v127 = vrot.slane %v68, %v126
    %v128 = vmul.f32 %v120, %v127
    %v129 = vmul.f32 %v121, %v127
    %v130 = vmul.f32 %v122, %v127
    %v131 = vmul.f32 %v123, %v127
    %v132 = vlaneseq
    %v133 = vshrl.u32 %v132, 7
    %v134 = vsub.s32 1, %v133
    %v135 = vrot.slane %v68, %v134
    %v136 = vadd.f32 %v128, %v135
    %v137 = vadd.f32 %v129, %v135
    %v138 = vadd.f32 %v130, %v135
    %v139 = vadd.f32 %v131, %v135
    %v140 = vpack.c.bf16 %v137, %v136
    %v141 = vpack.c.bf16 %v139, %v138
    %v142 = vld [vmem:[%s1] sm:$0xff]
    %v143 = vld [vmem:[%s1 + $0x8] sm:$0xff]
    %v144 = vld [vmem:[%s1 + $0x10] sm:$0xff]
    %v145 = vld [vmem:[%s1 + $0x18] sm:$0xff]
    %v146 = vld [vmem:[%s1 + $0x20] sm:$0xff]
    %v147 = vld [vmem:[%s1 + $0x28] sm:$0xff]
    %v148 = vld [vmem:[%s1 + $0x30] sm:$0xff]
    %v149 = vld [vmem:[%s1 + $0x38] sm:$0xff]
    %v150 = vlaneseq
    %v151 = vshrl.u32 %v150, 7
    %v152 = vsub.s32 7, %v151
    %v153 = vrot.slane %v68, %v152
    %v154 = vlaneseq
    %v155 = vshrl.u32 %v154, 7
    %v156 = vsub.s32 7, %v155
    %v157 = vrot.slane %v69, %v156
    %v166 = vunpack.c.l.b16 %v142
    %v167 = vunpack.c.h.b16 %v142
    %v168 = vunpack.c.l.b16 %v143
    %v169 = vunpack.c.h.b16 %v143
    %v170 = vunpack.c.l.b16 %v144
    %v171 = vunpack.c.h.b16 %v144
    %v172 = vunpack.c.l.b16 %v145
    %v173 = vunpack.c.h.b16 %v145
    %v174 = vunpack.c.l.b16 %v146
    %v175 = vunpack.c.h.b16 %v146
    %v176 = vunpack.c.l.b16 %v147
    %v177 = vunpack.c.h.b16 %v147
    %v178 = vunpack.c.l.b16 %v148
    %v179 = vunpack.c.h.b16 %v148
    %v180 = vunpack.c.l.b16 %v149
    %v181 = vunpack.c.h.b16 %v149
    %v182 = vpack.c.b16 %v168, %v166
    %v183 = vpack.c.b16 %v169, %v167
    %v184 = vpack.c.b16 %v172, %v170
    %v185 = vpack.c.b16 %v173, %v171
    %v186 = vpack.c.b16 %v176, %v174
    %v187 = vpack.c.b16 %v177, %v175
    %v188 = vpack.c.b16 %v180, %v178
    %v189 = vpack.c.b16 %v181, %v179
    %v199 = vsel %vm70, %v140, 0
    %v202 = vsel %vm70, %v141, 0
    %204 = vmatprep.subr.bf16.mxu0 0
    %205 = vmatpush1.bf16.msra.mxu0 0
    %206 = vmatprep.subr.bf16.mxu0 0
    %207 = vmatpush1.bf16.msra.mxu0 0
    %208 = vmatprep.subr.bf16.mxu0 0
    %209 = vmatpush1.bf16.msra.mxu0 0
    %210 = vmatprep.subr.bf16.mxu0 0
    %211 = vmatpush1.bf16.msra.mxu0 0
    %212 = vmatprep.subr.bf16.mxu0 %v189
    %213 = vmatpush1.bf16.msra.mxu0 %v188
    %214 = vmatprep.subr.bf16.mxu0 %v187
    %215 = vmatpush1.bf16.msra.mxu0 %v186
    %216 = vmatprep.subr.bf16.mxu0 %v185
    %217 = vmatpush1.bf16.msra.mxu0 %v184
    %218 = vmatprep.subr.bf16.mxu0 %v183
    %219 = vmatpush1.bf16.msra.mxu0 %v182
    %220 = vmatprep.subr.bf16.mxu0 0
    %221 = vmatpush2.bf16.msra.mxu0 0
    %222 = vmatprep.subr.bf16.mxu0 0
    %223 = vmatpush2.bf16.msra.mxu0 0
    %224 = vmatprep.subr.bf16.mxu0 0
    %225 = vmatpush2.bf16.msra.mxu0 0
    %226 = vmatprep.subr.bf16.mxu0 0
    %227 = vmatpush2.bf16.msra.mxu0 0
    %228 = vmatprep.subr.bf16.mxu0 0
    %229 = vmatpush2.bf16.msra.mxu0 0
    %230 = vmatprep.subr.bf16.mxu0 0
    %231 = vmatpush2.bf16.msra.mxu0 0
    %232 = vmatprep.subr.bf16.mxu0 0
    %233 = vmatpush2.bf16.msra.mxu0 0
    %234 = vmatprep.subr.bf16.mxu0 0
    %235 = vmatpush2.bf16.msra.mxu0 0
    %236 = vmatprep.mubr.bf16.mxu0 0
    %237 = vmatmul.mubr.bf16.gmra.mxu0 %v199
    %v238 = vpop.f32.mrf.mxu0
    %v239 = vadd.f32 %v153, %v238
    %v240 = vpop.f32.mrf.mxu0
    %v241 = vadd.f32 %v157, %v240
    %v242 = vpop.f32.mrf.mxu0
    %v243 = vadd.f32 %v153, %v242
    %v244 = vpop.f32.mrf.mxu0
    %v245 = vadd.f32 %v157, %v244
    %246 = vmatprep.mubr.bf16.mxu0 0
    %247 = vmatmul.mubr.bf16.gmra.mxu0 %v202
    %v248 = vpop.f32.mrf.mxu0
    %v249 = vadd.f32 %v153, %v248
    %v250 = vpop.f32.mrf.mxu0
    %v251 = vadd.f32 %v157, %v250
    %v252 = vpop.f32.mrf.mxu0
    %v253 = vadd.f32 %v153, %v252
    %v254 = vpop.f32.mrf.mxu0
    %v255 = vadd.f32 %v157, %v254
    %256 = vdwg.mxu0
    %261 = vrot.lane.b32.xlu0 %v239, 80
    %v262 = vpop.permute.xlu0 %261
    %263 = vrot.lane.b32.xlu0 %v243, 80
    %v264 = vpop.permute.xlu0 %263
    %265 = vrot.lane.b32.xlu0 %v249, 80
    %v266 = vpop.permute.xlu0 %265
    %267 = vrot.lane.b32.xlu0 %v253, 80
    %v268 = vpop.permute.xlu0 %267
    %277 = vrot.lane.b32.xlu0 %v239, 32
    %v278 = vpop.permute.xlu0 %277
    %279 = vrot.lane.b32.xlu0 %v241, 32
    %v280 = vpop.permute.xlu0 %279
    %281 = vrot.lane.b32.xlu0 %v243, 32
    %v282 = vpop.permute.xlu0 %281
    %283 = vrot.lane.b32.xlu0 %v245, 32
    %v284 = vpop.permute.xlu0 %283
    %285 = vrot.lane.b32.xlu0 %v249, 32
    %v286 = vpop.permute.xlu0 %285
    %287 = vrot.lane.b32.xlu0 %v251, 32
    %v288 = vpop.permute.xlu0 %287
    %289 = vrot.lane.b32.xlu0 %v253, 32
    %v290 = vpop.permute.xlu0 %289
    %291 = vrot.lane.b32.xlu0 %v255, 32
    %v292 = vpop.permute.xlu0 %291
    %vm293 = vcmask 261120
    %v294 = vsel %vm293, %v278, %v280
    %v295 = vsel %vm293, %v282, %v284
    %v296 = vsel %vm293, %v286, %v288
    %v297 = vsel %vm293, %v290, %v292
    %302 = vrot.lane.b32.xlu0 %v241, 112
    %v303 = vpop.permute.xlu0 %302
    %304 = vrot.lane.b32.xlu0 %v245, 112
    %v305 = vpop.permute.xlu0 %304
    %306 = vrot.lane.b32.xlu0 %v251, 112
    %v307 = vpop.permute.xlu0 %306
    %308 = vrot.lane.b32.xlu0 %v255, 112
    %v309 = vpop.permute.xlu0 %308
    %v314 = vcombine.low %v239, %v294
    %v315 = vcombine.high %v239, %v294
    %v317 = vunpack.c.l.s4 1983009808
    %v318 = vunpack.c.0.s8 %v317
    %v319 = vlaneseq
    %v320 = vshrl.u32 %v319, 7
    %v321 = vsub.s32 %v318, %v320
    %v322 = vrot.slane %v314, %v321
    %v324 = vunpack.c.l.s4 1983009808
    %v325 = vunpack.c.0.s8 %v324
    %v326 = vlaneseq
    %v327 = vshrl.u32 %v326, 7
    %v328 = vsub.s32 %v325, %v327
    %v329 = vrot.slane %v315, %v328
    %v330 = vcombine.low %v262, %v303
    %v331 = vcombine.high %v262, %v303
    %v333 = vunpack.c.l.s4 1983009808
    %v334 = vunpack.c.0.s8 %v333
    %v335 = vlaneseq
    %v336 = vshrl.u32 %v335, 7
    %v337 = vsub.s32 %v334, %v336
    %v338 = vrot.slane %v330, %v337
    %v340 = vunpack.c.l.s4 1983009808
    %v341 = vunpack.c.0.s8 %v340
    %v342 = vlaneseq
    %v343 = vshrl.u32 %v342, 7
    %v344 = vsub.s32 %v341, %v343
    %v345 = vrot.slane %v331, %v344
    %v346 = vcombine.low %v322, %v338
    %v347 = vcombine.high %v322, %v338
    %v349 = vunpack.c.l.s4 1934713408
    %v350 = vunpack.c.0.s8 %v349
    %v351 = vlaneseq
    %v352 = vshrl.u32 %v351, 7
    %v353 = vsub.s32 %v350, %v352
    %v354 = vrot.slane %v346, %v353
    %v356 = vunpack.c.l.s4 1934713408
    %v357 = vunpack.c.0.s8 %v356
    %v358 = vlaneseq
    %v359 = vshrl.u32 %v358, 7
    %v360 = vsub.s32 %v357, %v359
    %v361 = vrot.slane %v347, %v360
    %v362 = vcombine.low %v329, %v345
    %v363 = vcombine.high %v329, %v345
    %v365 = vunpack.c.l.s4 1934713408
    %v366 = vunpack.c.0.s8 %v365
    %v367 = vlaneseq
    %v368 = vshrl.u32 %v367, 7
    %v369 = vsub.s32 %v366, %v368
    %v370 = vrot.slane %v362, %v369
    %v372 = vunpack.c.l.s4 1934713408
    %v373 = vunpack.c.0.s8 %v372
    %v374 = vlaneseq
    %v375 = vshrl.u32 %v374, 7
    %v376 = vsub.s32 %v373, %v375
    %v377 = vrot.slane %v363, %v376
    %v378 = vcombine.high %v354, 0.0
    %v379 = vcombine.high %v361, 0.0
    %v380 = vcombine.high %v370, 0.0
    %v381 = vcombine.high %v377, 0.0
    %v382 = vcombine.low %v243, %v295
    %v383 = vcombine.high %v243, %v295
    %v385 = vunpack.c.l.s4 1983009808
    %v386 = vunpack.c.0.s8 %v385
    %v387 = vlaneseq
    %v388 = vshrl.u32 %v387, 7
    %v389 = vsub.s32 %v386, %v388
    %v390 = vrot.slane %v382, %v389
    %v392 = vunpack.c.l.s4 1983009808
    %v393 = vunpack.c.0.s8 %v392
    %v394 = vlaneseq
    %v395 = vshrl.u32 %v394, 7
    %v396 = vsub.s32 %v393, %v395
    %v397 = vrot.slane %v383, %v396
    %v398 = vcombine.low %v264, %v305
    %v399 = vcombine.high %v264, %v305
    %v401 = vunpack.c.l.s4 1983009808
    %v402 = vunpack.c.0.s8 %v401
    %v403 = vlaneseq
    %v404 = vshrl.u32 %v403, 7
    %v405 = vsub.s32 %v402, %v404
    %v406 = vrot.slane %v398, %v405
    %v408 = vunpack.c.l.s4 1983009808
    %v409 = vunpack.c.0.s8 %v408
    %v410 = vlaneseq
    %v411 = vshrl.u32 %v410, 7
    %v412 = vsub.s32 %v409, %v411
    %v413 = vrot.slane %v399, %v412
    %v414 = vcombine.low %v390, %v406
    %v415 = vcombine.high %v390, %v406
    %v417 = vunpack.c.l.s4 1934713408
    %v418 = vunpack.c.0.s8 %v417
    %v419 = vlaneseq
    %v420 = vshrl.u32 %v419, 7
    %v421 = vsub.s32 %v418, %v420
    %v422 = vrot.slane %v414, %v421
    %v424 = vunpack.c.l.s4 1934713408
    %v425 = vunpack.c.0.s8 %v424
    %v426 = vlaneseq
    %v427 = vshrl.u32 %v426, 7
    %v428 = vsub.s32 %v425, %v427
    %v429 = vrot.slane %v415, %v428
    %v430 = vcombine.low %v397, %v413
    %v431 = vcombine.high %v397, %v413
    %v433 = vunpack.c.l.s4 1934713408
    %v434 = vunpack.c.0.s8 %v433
    %v435 = vlaneseq
    %v436 = vshrl.u32 %v435, 7
    %v437 = vsub.s32 %v434, %v436
    %v438 = vrot.slane %v430, %v437
    %v440 = vunpack.c.l.s4 1934713408
    %v441 = vunpack.c.0.s8 %v440
    %v442 = vlaneseq
    %v443 = vshrl.u32 %v442, 7
    %v444 = vsub.s32 %v441, %v443
    %v445 = vrot.slane %v431, %v444
    %v446 = vcombine.high %v422, 0.0
    %v447 = vcombine.high %v429, 0.0
    %v448 = vcombine.high %v438, 0.0
    %v449 = vcombine.high %v445, 0.0
    %v450 = vcombine.low %v249, %v296
    %v451 = vcombine.high %v249, %v296
    %v453 = vunpack.c.l.s4 1983009808
    %v454 = vunpack.c.0.s8 %v453
    %v455 = vlaneseq
    %v456 = vshrl.u32 %v455, 7
    %v457 = vsub.s32 %v454, %v456
    %v458 = vrot.slane %v450, %v457
    %v460 = vunpack.c.l.s4 1983009808
    %v461 = vunpack.c.0.s8 %v460
    %v462 = vlaneseq
    %v463 = vshrl.u32 %v462, 7
    %v464 = vsub.s32 %v461, %v463
    %v465 = vrot.slane %v451, %v464
    %v466 = vcombine.low %v266, %v307
    %v467 = vcombine.high %v266, %v307
    %v469 = vunpack.c.l.s4 1983009808
    %v470 = vunpack.c.0.s8 %v469
    %v471 = vlaneseq
    %v472 = vshrl.u32 %v471, 7
    %v473 = vsub.s32 %v470, %v472
    %v474 = vrot.slane %v466, %v473
    %v476 = vunpack.c.l.s4 1983009808
    %v477 = vunpack.c.0.s8 %v476
    %v478 = vlaneseq
    %v479 = vshrl.u32 %v478, 7
    %v480 = vsub.s32 %v477, %v479
    %v481 = vrot.slane %v467, %v480
    %v482 = vcombine.low %v458, %v474
    %v483 = vcombine.high %v458, %v474
    %v485 = vunpack.c.l.s4 1934713408
    %v486 = vunpack.c.0.s8 %v485
    %v487 = vlaneseq
    %v488 = vshrl.u32 %v487, 7
    %v489 = vsub.s32 %v486, %v488
    %v490 = vrot.slane %v482, %v489
    %v492 = vunpack.c.l.s4 1934713408
    %v493 = vunpack.c.0.s8 %v492
    %v494 = vlaneseq
    %v495 = vshrl.u32 %v494, 7
    %v496 = vsub.s32 %v493, %v495
    %v497 = vrot.slane %v483, %v496
    %v498 = vcombine.low %v465, %v481
    %v499 = vcombine.high %v465, %v481
    %v501 = vunpack.c.l.s4 1934713408
    %v502 = vunpack.c.0.s8 %v501
    %v503 = vlaneseq
    %v504 = vshrl.u32 %v503, 7
    %v505 = vsub.s32 %v502, %v504
    %v506 = vrot.slane %v498, %v505
    %v508 = vunpack.c.l.s4 1934713408
    %v509 = vunpack.c.0.s8 %v508
    %v510 = vlaneseq
    %v511 = vshrl.u32 %v510, 7
    %v512 = vsub.s32 %v509, %v511
    %v513 = vrot.slane %v499, %v512
    %v514 = vcombine.high %v490, 0.0
    %v515 = vcombine.high %v497, 0.0
    %v516 = vcombine.high %v506, 0.0
    %v517 = vcombine.high %v513, 0.0
    %v518 = vcombine.low %v253, %v297
    %v519 = vcombine.high %v253, %v297
    %v521 = vunpack.c.l.s4 1983009808
    %v522 = vunpack.c.0.s8 %v521
    %v523 = vlaneseq
    %v524 = vshrl.u32 %v523, 7
    %v525 = vsub.s32 %v522, %v524
    %v526 = vrot.slane %v518, %v525
    %v528 = vunpack.c.l.s4 1983009808
    %v529 = vunpack.c.0.s8 %v528
    %v530 = vlaneseq
    %v531 = vshrl.u32 %v530, 7
    %v532 = vsub.s32 %v529, %v531
    %v533 = vrot.slane %v519, %v532
    %v534 = vcombine.low %v268, %v309
    %v535 = vcombine.high %v268, %v309
    %v537 = vunpack.c.l.s4 1983009808
    %v538 = vunpack.c.0.s8 %v537
    %v539 = vlaneseq
    %v540 = vshrl.u32 %v539, 7
    %v541 = vsub.s32 %v538, %v540
    %v542 = vrot.slane %v534, %v541
    %v544 = vunpack.c.l.s4 1983009808
    %v545 = vunpack.c.0.s8 %v544
    %v546 = vlaneseq
    %v547 = vshrl.u32 %v546, 7
    %v548 = vsub.s32 %v545, %v547
    %v549 = vrot.slane %v535, %v548
    %v550 = vcombine.low %v526, %v542
    %v551 = vcombine.high %v526, %v542
    %v553 = vunpack.c.l.s4 1934713408
    %v554 = vunpack.c.0.s8 %v553
    %v555 = vlaneseq
    %v556 = vshrl.u32 %v555, 7
    %v557 = vsub.s32 %v554, %v556
    %v558 = vrot.slane %v550, %v557
    %v560 = vunpack.c.l.s4 1934713408
    %v561 = vunpack.c.0.s8 %v560
    %v562 = vlaneseq
    %v563 = vshrl.u32 %v562, 7
    %v564 = vsub.s32 %v561, %v563
    %v565 = vrot.slane %v551, %v564
    %v566 = vcombine.low %v533, %v549
    %v567 = vcombine.high %v533, %v549
    %v569 = vunpack.c.l.s4 1934713408
    %v570 = vunpack.c.0.s8 %v569
    %v571 = vlaneseq
    %v572 = vshrl.u32 %v571, 7
    %v573 = vsub.s32 %v570, %v572
    %v574 = vrot.slane %v566, %v573
    %v576 = vunpack.c.l.s4 1934713408
    %v577 = vunpack.c.0.s8 %v576
    %v578 = vlaneseq
    %v579 = vshrl.u32 %v578, 7
    %v580 = vsub.s32 %v577, %v579
    %v581 = vrot.slane %v567, %v580
    %v582 = vcombine.high %v558, 0.0
    %v583 = vcombine.high %v565, 0.0
    %v584 = vcombine.high %v574, 0.0
    %v585 = vcombine.high %v581, 0.0
    %v586 = vcombine.low %v354, %v361
    %v588 = vunpack.c.l.s4 1983009808
    %v589 = vunpack.c.0.s8 %v588
    %v590 = vlaneseq
    %v591 = vshrl.u32 %v590, 7
    %v592 = vsub.s32 %v589, %v591
    %v593 = vrot.slane %v586, %v592
    %v594 = vcombine.low %v378, %v379
    %v596 = vunpack.c.l.s4 1983009808
    %v597 = vunpack.c.0.s8 %v596
    %v598 = vlaneseq
    %v599 = vshrl.u32 %v598, 7
    %v600 = vsub.s32 %v597, %v599
    %v601 = vrot.slane %v594, %v600
    %v602 = vcombine.low %v370, %v377
    %v604 = vunpack.c.l.s4 1983009808
    %v605 = vunpack.c.0.s8 %v604
    %v606 = vlaneseq
    %v607 = vshrl.u32 %v606, 7
    %v608 = vsub.s32 %v605, %v607
    %v609 = vrot.slane %v602, %v608
    %v610 = vcombine.low %v380, %v381
    %v612 = vunpack.c.l.s4 1983009808
    %v613 = vunpack.c.0.s8 %v612
    %v614 = vlaneseq
    %v615 = vshrl.u32 %v614, 7
    %v616 = vsub.s32 %v613, %v615
    %v617 = vrot.slane %v610, %v616
    %v618 = vcombine.low %v593, %v601
    %v619 = vcombine.high %v593, %v601
    %v621 = vunpack.c.l.s4 1934713408
    %v622 = vunpack.c.0.s8 %v621
    %v623 = vlaneseq
    %v624 = vshrl.u32 %v623, 7
    %v625 = vsub.s32 %v622, %v624
    %v626 = vrot.slane %v618, %v625
    %v628 = vunpack.c.l.s4 1934713408
    %v629 = vunpack.c.0.s8 %v628
    %v630 = vlaneseq
    %v631 = vshrl.u32 %v630, 7
    %v632 = vsub.s32 %v629, %v631
    %v633 = vrot.slane %v619, %v632
    %v634 = vcombine.low %v609, %v617
    %v635 = vcombine.high %v609, %v617
    %v637 = vunpack.c.l.s4 1934713408
    %v638 = vunpack.c.0.s8 %v637
    %v639 = vlaneseq
    %v640 = vshrl.u32 %v639, 7
    %v641 = vsub.s32 %v638, %v640
    %v642 = vrot.slane %v634, %v641
    %v644 = vunpack.c.l.s4 1934713408
    %v645 = vunpack.c.0.s8 %v644
    %v646 = vlaneseq
    %v647 = vshrl.u32 %v646, 7
    %v648 = vsub.s32 %v645, %v647
    %v649 = vrot.slane %v635, %v648
    %v650 = vcombine.low %v626, %v642
    %v651 = vcombine.high %v626, %v642
    %v652 = vcombine.low %v633, %v649
    %v653 = vcombine.high %v633, %v649
    %v654 = vcombine.low %v422, %v429
    %v656 = vunpack.c.l.s4 1983009808
    %v657 = vunpack.c.0.s8 %v656
    %v658 = vlaneseq
    %v659 = vshrl.u32 %v658, 7
    %v660 = vsub.s32 %v657, %v659
    %v661 = vrot.slane %v654, %v660
    %v662 = vcombine.low %v446, %v447
    %v664 = vunpack.c.l.s4 1983009808
    %v665 = vunpack.c.0.s8 %v664
    %v666 = vlaneseq
    %v667 = vshrl.u32 %v666, 7
    %v668 = vsub.s32 %v665, %v667
    %v669 = vrot.slane %v662, %v668
    %v670 = vcombine.low %v438, %v445
    %v672 = vunpack.c.l.s4 1983009808
    %v673 = vunpack.c.0.s8 %v672
    %v674 = vlaneseq
    %v675 = vshrl.u32 %v674, 7
    %v676 = vsub.s32 %v673, %v675
    %v677 = vrot.slane %v670, %v676
    %v678 = vcombine.low %v448, %v449
    %v680 = vunpack.c.l.s4 1983009808
    %v681 = vunpack.c.0.s8 %v680
    %v682 = vlaneseq
    %v683 = vshrl.u32 %v682, 7
    %v684 = vsub.s32 %v681, %v683
    %v685 = vrot.slane %v678, %v684
    %v686 = vcombine.low %v661, %v669
    %v687 = vcombine.high %v661, %v669
    %v689 = vunpack.c.l.s4 1934713408
    %v690 = vunpack.c.0.s8 %v689
    %v691 = vlaneseq
    %v692 = vshrl.u32 %v691, 7
    %v693 = vsub.s32 %v690, %v692
    %v694 = vrot.slane %v686, %v693
    %v696 = vunpack.c.l.s4 1934713408
    %v697 = vunpack.c.0.s8 %v696
    %v698 = vlaneseq
    %v699 = vshrl.u32 %v698, 7
    %v700 = vsub.s32 %v697, %v699
    %v701 = vrot.slane %v687, %v700
    %v702 = vcombine.low %v677, %v685
    %v703 = vcombine.high %v677, %v685
    %v705 = vunpack.c.l.s4 1934713408
    %v706 = vunpack.c.0.s8 %v705
    %v707 = vlaneseq
    %v708 = vshrl.u32 %v707, 7
    %v709 = vsub.s32 %v706, %v708
    %v710 = vrot.slane %v702, %v709
    %v712 = vunpack.c.l.s4 1934713408
    %v713 = vunpack.c.0.s8 %v712
    %v714 = vlaneseq
    %v715 = vshrl.u32 %v714, 7
    %v716 = vsub.s32 %v713, %v715
    %v717 = vrot.slane %v703, %v716
    %v718 = vcombine.low %v694, %v710
    %v719 = vcombine.high %v694, %v710
    %v720 = vcombine.low %v701, %v717
    %v721 = vcombine.high %v701, %v717
    %v722 = vcombine.low %v490, %v497
    %v724 = vunpack.c.l.s4 1983009808
    %v725 = vunpack.c.0.s8 %v724
    %v726 = vlaneseq
    %v727 = vshrl.u32 %v726, 7
    %v728 = vsub.s32 %v725, %v727
    %v729 = vrot.slane %v722, %v728
    %v730 = vcombine.low %v514, %v515
    %v732 = vunpack.c.l.s4 1983009808
    %v733 = vunpack.c.0.s8 %v732
    %v734 = vlaneseq
    %v735 = vshrl.u32 %v734, 7
    %v736 = vsub.s32 %v733, %v735
    %v737 = vrot.slane %v730, %v736
    %v738 = vcombine.low %v506, %v513
    %v740 = vunpack.c.l.s4 1983009808
    %v741 = vunpack.c.0.s8 %v740
    %v742 = vlaneseq
    %v743 = vshrl.u32 %v742, 7
    %v744 = vsub.s32 %v741, %v743
    %v745 = vrot.slane %v738, %v744
    %v746 = vcombine.low %v516, %v517
    %v748 = vunpack.c.l.s4 1983009808
    %v749 = vunpack.c.0.s8 %v748
    %v750 = vlaneseq
    %v751 = vshrl.u32 %v750, 7
    %v752 = vsub.s32 %v749, %v751
    %v753 = vrot.slane %v746, %v752
    %v754 = vcombine.low %v729, %v737
    %v755 = vcombine.high %v729, %v737
    %v757 = vunpack.c.l.s4 1934713408
    %v758 = vunpack.c.0.s8 %v757
    %v759 = vlaneseq
    %v760 = vshrl.u32 %v759, 7
    %v761 = vsub.s32 %v758, %v760
    %v762 = vrot.slane %v754, %v761
    %v764 = vunpack.c.l.s4 1934713408
    %v765 = vunpack.c.0.s8 %v764
    %v766 = vlaneseq
    %v767 = vshrl.u32 %v766, 7
    %v768 = vsub.s32 %v765, %v767
    %v769 = vrot.slane %v755, %v768
    %v770 = vcombine.low %v745, %v753
    %v771 = vcombine.high %v745, %v753
    %v773 = vunpack.c.l.s4 1934713408
    %v774 = vunpack.c.0.s8 %v773
    %v775 = vlaneseq
    %v776 = vshrl.u32 %v775, 7
    %v777 = vsub.s32 %v774, %v776
    %v778 = vrot.slane %v770, %v777
    %v780 = vunpack.c.l.s4 1934713408
    %v781 = vunpack.c.0.s8 %v780
    %v782 = vlaneseq
    %v783 = vshrl.u32 %v782, 7
    %v784 = vsub.s32 %v781, %v783
    %v785 = vrot.slane %v771, %v784
    %v786 = vcombine.low %v762, %v778
    %v787 = vcombine.high %v762, %v778
    %v788 = vcombine.low %v769, %v785
    %v789 = vcombine.high %v769, %v785
    %v790 = vcombine.low %v558, %v565
    %v792 = vunpack.c.l.s4 1983009808
    %v793 = vunpack.c.0.s8 %v792
    %v794 = vlaneseq
    %v795 = vshrl.u32 %v794, 7
    %v796 = vsub.s32 %v793, %v795
    %v797 = vrot.slane %v790, %v796
    %v798 = vcombine.low %v582, %v583
    %v800 = vunpack.c.l.s4 1983009808
    %v801 = vunpack.c.0.s8 %v800
    %v802 = vlaneseq
    %v803 = vshrl.u32 %v802, 7
    %v804 = vsub.s32 %v801, %v803
    %v805 = vrot.slane %v798, %v804
    %v806 = vcombine.low %v574, %v581
    %v808 = vunpack.c.l.s4 1983009808
    %v809 = vunpack.c.0.s8 %v808
    %v810 = vlaneseq
    %v811 = vshrl.u32 %v810, 7
    %v812 = vsub.s32 %v809, %v811
    %v813 = vrot.slane %v806, %v812
    %v814 = vcombine.low %v584, %v585
    %v816 = vunpack.c.l.s4 1983009808
    %v817 = vunpack.c.0.s8 %v816
    %v818 = vlaneseq
    %v819 = vshrl.u32 %v818, 7
    %v820 = vsub.s32 %v817, %v819
    %v821 = vrot.slane %v814, %v820
    %v822 = vcombine.low %v797, %v805
    %v823 = vcombine.high %v797, %v805
    %v825 = vunpack.c.l.s4 1934713408
    %v826 = vunpack.c.0.s8 %v825
    %v827 = vlaneseq
    %v828 = vshrl.u32 %v827, 7
    %v829 = vsub.s32 %v826, %v828
    %v830 = vrot.slane %v822, %v829
    %v832 = vunpack.c.l.s4 1934713408
    %v833 = vunpack.c.0.s8 %v832
    %v834 = vlaneseq
    %v835 = vshrl.u32 %v834, 7
    %v836 = vsub.s32 %v833, %v835
    %v837 = vrot.slane %v823, %v836
    %v838 = vcombine.low %v813, %v821
    %v839 = vcombine.high %v813, %v821
    %v841 = vunpack.c.l.s4 1934713408
    %v842 = vunpack.c.0.s8 %v841
    %v843 = vlaneseq
    %v844 = vshrl.u32 %v843, 7
    %v845 = vsub.s32 %v842, %v844
    %v846 = vrot.slane %v838, %v845
    %v848 = vunpack.c.l.s4 1934713408
    %v849 = vunpack.c.0.s8 %v848
    %v850 = vlaneseq
    %v851 = vshrl.u32 %v850, 7
    %v852 = vsub.s32 %v849, %v851
    %v853 = vrot.slane %v839, %v852
    %v854 = vcombine.low %v830, %v846
    %v855 = vcombine.high %v830, %v846
    %v856 = vcombine.low %v837, %v853
    %v857 = vcombine.high %v837, %v853
    %v858 = vpack.c.bf16 %v718, %v650
    %v859 = vpack.c.bf16 %v719, %v651
    %v860 = vpack.c.bf16 %v720, %v652
    %v861 = vpack.c.bf16 %v721, %v653
    %v862 = vpack.c.bf16 %v854, %v786
    %v863 = vpack.c.bf16 %v855, %v787
    %v864 = vpack.c.bf16 %v856, %v788
    %v865 = vpack.c.bf16 %v857, %v789
    %867 = vrot.lane.b32.xlu0 %v858, 112
    %v868 = vpop.permute.xlu0 %867
    %vm869 = vcmask 130048
    %v871 = vsel %vm869, %v858, 0
    %v874 = vsel %vm869, %v868, 0
    %876 = vmatprep.subr.bf16.mxu0 0
    %877 = vmatpush1.bf16.xpose.msra.mxu0 0
    %878 = vmatprep.subr.bf16.mxu0 0
    %879 = vmatpush1.bf16.xpose.msra.mxu0 0
    %880 = vmatprep.subr.bf16.mxu0 0
    %881 = vmatpush1.bf16.xpose.msra.mxu0 0
    %882 = vmatprep.subr.bf16.mxu0 0
    %883 = vmatpush1.bf16.xpose.msra.mxu0 0
    %884 = vmatprep.subr.bf16.mxu0 0
    %885 = vmatpush1.bf16.xpose.msra.mxu0 0
    %886 = vmatprep.subr.bf16.mxu0 0
    %887 = vmatpush1.bf16.xpose.msra.mxu0 0
    %888 = vmatprep.subr.bf16.mxu0 0
    %889 = vmatpush1.bf16.xpose.msra.mxu0 0
    %890 = vmatprep.subr.bf16.mxu0 0
    %891 = vmatpush1.bf16.xpose.msra.mxu0 %v874
    %892 = vmatprep.subr.bf16.mxu0 0
    %893 = vmatpush2.bf16.xpose.msra.mxu0 0
    %894 = vmatprep.subr.bf16.mxu0 0
    %895 = vmatpush2.bf16.xpose.msra.mxu0 0
    %896 = vmatprep.subr.bf16.mxu0 0
    %897 = vmatpush2.bf16.xpose.msra.mxu0 0
    %898 = vmatprep.subr.bf16.mxu0 0
    %899 = vmatpush2.bf16.xpose.msra.mxu0 0
    %900 = vmatprep.subr.bf16.mxu0 0
    %901 = vmatpush2.bf16.xpose.msra.mxu0 0
    %902 = vmatprep.subr.bf16.mxu0 0
    %903 = vmatpush2.bf16.xpose.msra.mxu0 0
    %904 = vmatprep.subr.bf16.mxu0 0
    %905 = vmatpush2.bf16.xpose.msra.mxu0 0
    %906 = vmatprep.subr.bf16.mxu0 0
    %907 = vmatpush2.bf16.xpose.msra.mxu0 0
    %908 = vmatprep.mubr.bf16.mxu0 0
    %909 = vmatmul.mubr.bf16.gmra.mxu0 %v871
    %v910 = vpop.f32.mrf.mxu0
    %v911 = vadd.f32 0.0, %v910
    %v912 = vpop.f32.mrf.mxu0
    %v913 = vpop.f32.mrf.mxu0
    %v914 = vadd.f32 0.0, %v913
    %v915 = vpop.f32.mrf.mxu0
    %916 = vdwg.mxu0
    %918 = vrot.lane.b32.xlu0 %v859, 112
    %v919 = vpop.permute.xlu0 %918
    %v921 = vsel %vm869, %v859, 0
    %v924 = vsel %vm869, %v919, 0
    %926 = vmatprep.subr.bf16.mxu0 0
    %927 = vmatpush1.bf16.xpose.msra.mxu0 0
    %928 = vmatprep.subr.bf16.mxu0 0
    %929 = vmatpush1.bf16.xpose.msra.mxu0 0
    %930 = vmatprep.subr.bf16.mxu0 0
    %931 = vmatpush1.bf16.xpose.msra.mxu0 0
    %932 = vmatprep.subr.bf16.mxu0 0
    %933 = vmatpush1.bf16.xpose.msra.mxu0 0
    %934 = vmatprep.subr.bf16.mxu0 0
    %935 = vmatpush1.bf16.xpose.msra.mxu0 0
    %936 = vmatprep.subr.bf16.mxu0 0
    %937 = vmatpush1.bf16.xpose.msra.mxu0 0
    %938 = vmatprep.subr.bf16.mxu0 0
    %939 = vmatpush1.bf16.xpose.msra.mxu0 0
    %940 = vmatprep.subr.bf16.mxu0 0
    %941 = vmatpush1.bf16.xpose.msra.mxu0 %v924
    %942 = vmatprep.subr.bf16.mxu0 0
    %943 = vmatpush2.bf16.xpose.msra.mxu0 0
    %944 = vmatprep.subr.bf16.mxu0 0
    %945 = vmatpush2.bf16.xpose.msra.mxu0 0
    %946 = vmatprep.subr.bf16.mxu0 0
    %947 = vmatpush2.bf16.xpose.msra.mxu0 0
    %948 = vmatprep.subr.bf16.mxu0 0
    %949 = vmatpush2.bf16.xpose.msra.mxu0 0
    %950 = vmatprep.subr.bf16.mxu0 0
    %951 = vmatpush2.bf16.xpose.msra.mxu0 0
    %952 = vmatprep.subr.bf16.mxu0 0
    %953 = vmatpush2.bf16.xpose.msra.mxu0 0
    %954 = vmatprep.subr.bf16.mxu0 0
    %955 = vmatpush2.bf16.xpose.msra.mxu0 0
    %956 = vmatprep.subr.bf16.mxu0 0
    %957 = vmatpush2.bf16.xpose.msra.mxu0 0
    %958 = vmatprep.mubr.bf16.mxu0 0
    %959 = vmatmul.mubr.bf16.gmra.mxu0 %v921
    %v960 = vpop.f32.mrf.mxu0
    %v961 = vadd.f32 0.0, %v960
    %v962 = vpop.f32.mrf.mxu0
    %v963 = vpop.f32.mrf.mxu0
    %v964 = vadd.f32 0.0, %v963
    %v965 = vpop.f32.mrf.mxu0
    %966 = vdwg.mxu0
    %968 = vrot.lane.b32.xlu0 %v860, 112
    %v969 = vpop.permute.xlu0 %968
    %v971 = vsel %vm869, %v860, 0
    %v974 = vsel %vm869, %v969, 0
    %976 = vmatprep.subr.bf16.mxu0 0
    %977 = vmatpush1.bf16.xpose.msra.mxu0 0
    %978 = vmatprep.subr.bf16.mxu0 0
    %979 = vmatpush1.bf16.xpose.msra.mxu0 0
    %980 = vmatprep.subr.bf16.mxu0 0
    %981 = vmatpush1.bf16.xpose.msra.mxu0 0
    %982 = vmatprep.subr.bf16.mxu0 0
    %983 = vmatpush1.bf16.xpose.msra.mxu0 0
    %984 = vmatprep.subr.bf16.mxu0 0
    %985 = vmatpush1.bf16.xpose.msra.mxu0 0
    %986 = vmatprep.subr.bf16.mxu0 0
    %987 = vmatpush1.bf16.xpose.msra.mxu0 0
    %988 = vmatprep.subr.bf16.mxu0 0
    %989 = vmatpush1.bf16.xpose.msra.mxu0 0
    %990 = vmatprep.subr.bf16.mxu0 0
    %991 = vmatpush1.bf16.xpose.msra.mxu0 %v974
    %992 = vmatprep.subr.bf16.mxu0 0
    %993 = vmatpush2.bf16.xpose.msra.mxu0 0
    %994 = vmatprep.subr.bf16.mxu0 0
    %995 = vmatpush2.bf16.xpose.msra.mxu0 0
    %996 = vmatprep.subr.bf16.mxu0 0
    %997 = vmatpush2.bf16.xpose.msra.mxu0 0
    %998 = vmatprep.subr.bf16.mxu0 0
    %999 = vmatpush2.bf16.xpose.msra.mxu0 0
    %1000 = vmatprep.subr.bf16.mxu0 0
    %1001 = vmatpush2.bf16.xpose.msra.mxu0 0
    %1002 = vmatprep.subr.bf16.mxu0 0
    %1003 = vmatpush2.bf16.xpose.msra.mxu0 0
    %1004 = vmatprep.subr.bf16.mxu0 0
    %1005 = vmatpush2.bf16.xpose.msra.mxu0 0
    %1006 = vmatprep.subr.bf16.mxu0 0
    %1007 = vmatpush2.bf16.xpose.msra.mxu0 0
    %1008 = vmatprep.mubr.bf16.mxu0 0
    %1009 = vmatmul.mubr.bf16.gmra.mxu0 %v971
    %v1010 = vpop.f32.mrf.mxu0
    %v1011 = vadd.f32 0.0, %v1010
    %v1012 = vpop.f32.mrf.mxu0
    %v1013 = vpop.f32.mrf.mxu0
    %v1014 = vadd.f32 0.0, %v1013
    %v1015 = vpop.f32.mrf.mxu0
    %1016 = vdwg.mxu0
    %1018 = vrot.lane.b32.xlu0 %v861, 112
    %v1019 = vpop.permute.xlu0 %1018
    %v1021 = vsel %vm869, %v861, 0
    %v1024 = vsel %vm869, %v1019, 0
    %1026 = vmatprep.subr.bf16.mxu0 0
    %1027 = vmatpush1.bf16.xpose.msra.mxu0 0
    %1028 = vmatprep.subr.bf16.mxu0 0
    %1029 = vmatpush1.bf16.xpose.msra.mxu0 0
    %1030 = vmatprep.subr.bf16.mxu0 0
    %1031 = vmatpush1.bf16.xpose.msra.mxu0 0
    %1032 = vmatprep.subr.bf16.mxu0 0
    %1033 = vmatpush1.bf16.xpose.msra.mxu0 0
    %1034 = vmatprep.subr.bf16.mxu0 0
    %1035 = vmatpush1.bf16.xpose.msra.mxu0 0
    %1036 = vmatprep.subr.bf16.mxu0 0
    %1037 = vmatpush1.bf16.xpose.msra.mxu0 0
    %1038 = vmatprep.subr.bf16.mxu0 0
    %1039 = vmatpush1.bf16.xpose.msra.mxu0 0
    %1040 = vmatprep.subr.bf16.mxu0 0
    %1041 = vmatpush1.bf16.xpose.msra.mxu0 %v1024
    %1042 = vmatprep.subr.bf16.mxu0 0
    %1043 = vmatpush2.bf16.xpose.msra.mxu0 0
    %1044 = vmatprep.subr.bf16.mxu0 0
    %1045 = vmatpush2.bf16.xpose.msra.mxu0 0
    %1046 = vmatprep.subr.bf16.mxu0 0
    %1047 = vmatpush2.bf16.xpose.msra.mxu0 0
    %1048 = vmatprep.subr.bf16.mxu0 0
    %1049 = vmatpush2.bf16.xpose.msra.mxu0 0
    %1050 = vmatprep.subr.bf16.mxu0 0
    %1051 = vmatpush2.bf16.xpose.msra.mxu0 0
    %1052 = vmatprep.subr.bf16.mxu0 0
    %1053 = vmatpush2.bf16.xpose.msra.mxu0 0
    %1054 = vmatprep.subr.bf16.mxu0 0
    %1055 = vmatpush2.bf16.xpose.msra.mxu0 0
    %1056 = vmatprep.subr.bf16.mxu0 0
    %1057 = vmatpush2.bf16.xpose.msra.mxu0 0
    %1058 = vmatprep.mubr.bf16.mxu0 0
    %1059 = vmatmul.mubr.bf16.gmra.mxu0 %v1021
    %v1060 = vpop.f32.mrf.mxu0
    %v1061 = vadd.f32 0.0, %v1060
    %v1062 = vpop.f32.mrf.mxu0
    %v1063 = vpop.f32.mrf.mxu0
    %v1064 = vadd.f32 0.0, %v1063
    %v1065 = vpop.f32.mrf.mxu0
    %1066 = vdwg.mxu0
    %1068 = vrot.lane.b32.xlu0 %v862, 112
    %v1069 = vpop.permute.xlu0 %1068
    %v1071 = vsel %vm869, %v862, 0
    %v1074 = vsel %vm869, %v1069, 0
    %1076 = vmatprep.subr.bf16.mxu0 0
    %1077 = vmatpush1.bf16.xpose.msra.mxu0 0
    %1078 = vmatprep.subr.bf16.mxu0 0
    %1079 = vmatpush1.bf16.xpose.msra.mxu0 0
    %1080 = vmatprep.subr.bf16.mxu0 0
    %1081 = vmatpush1.bf16.xpose.msra.mxu0 0
    %1082 = vmatprep.subr.bf16.mxu0 0
    %1083 = vmatpush1.bf16.xpose.msra.mxu0 0
    %1084 = vmatprep.subr.bf16.mxu0 0
    %1085 = vmatpush1.bf16.xpose.msra.mxu0 0
    %1086 = vmatprep.subr.bf16.mxu0 0
    %1087 = vmatpush1.bf16.xpose.msra.mxu0 0
    %1088 = vmatprep.subr.bf16.mxu0 0
    %1089 = vmatpush1.bf16.xpose.msra.mxu0 0
    %1090 = vmatprep.subr.bf16.mxu0 0
    %1091 = vmatpush1.bf16.xpose.msra.mxu0 %v1074
    %1092 = vmatprep.subr.bf16.mxu0 0
    %1093 = vmatpush2.bf16.xpose.msra.mxu0 0
    %1094 = vmatprep.subr.bf16.mxu0 0
    %1095 = vmatpush2.bf16.xpose.msra.mxu0 0
    %1096 = vmatprep.subr.bf16.mxu0 0
    %1097 = vmatpush2.bf16.xpose.msra.mxu0 0
    %1098 = vmatprep.subr.bf16.mxu0 0
    %1099 = vmatpush2.bf16.xpose.msra.mxu0 0
    %1100 = vmatprep.subr.bf16.mxu0 0
    %1101 = vmatpush2.bf16.xpose.msra.mxu0 0
    %1102 = vmatprep.subr.bf16.mxu0 0
    %1103 = vmatpush2.bf16.xpose.msra.mxu0 0
    %1104 = vmatprep.subr.bf16.mxu0 0
    %1105 = vmatpush2.bf16.xpose.msra.mxu0 0
    %1106 = vmatprep.subr.bf16.mxu0 0
    %1107 = vmatpush2.bf16.xpose.msra.mxu0 0
    %1108 = vmatprep.mubr.bf16.mxu0 0
    %1109 = vmatmul.mubr.bf16.gmra.mxu0 %v1071
    %v1110 = vpop.f32.mrf.mxu0
    %v1111 = vadd.f32 0.0, %v1110
    %v1112 = vpop.f32.mrf.mxu0
    %v1113 = vpop.f32.mrf.mxu0
    %v1114 = vadd.f32 0.0, %v1113
    %v1115 = vpop.f32.mrf.mxu0
    %1116 = vdwg.mxu0
    %1118 = vrot.lane.b32.xlu0 %v863, 112
    %v1119 = vpop.permute.xlu0 %1118
    %v1121 = vsel %vm869, %v863, 0
    %v1124 = vsel %vm869, %v1119, 0
    %1126 = vmatprep.subr.bf16.mxu0 0
    %1127 = vmatpush1.bf16.xpose.msra.mxu0 0
    %1128 = vmatprep.subr.bf16.mxu0 0
    %1129 = vmatpush1.bf16.xpose.msra.mxu0 0
    %1130 = vmatprep.subr.bf16.mxu0 0
    %1131 = vmatpush1.bf16.xpose.msra.mxu0 0
    %1132 = vmatprep.subr.bf16.mxu0 0
    %1133 = vmatpush1.bf16.xpose.msra.mxu0 0
    %1134 = vmatprep.subr.bf16.mxu0 0
    %1135 = vmatpush1.bf16.xpose.msra.mxu0 0
    %1136 = vmatprep.subr.bf16.mxu0 0
    %1137 = vmatpush1.bf16.xpose.msra.mxu0 0
    %1138 = vmatprep.subr.bf16.mxu0 0
    %1139 = vmatpush1.bf16.xpose.msra.mxu0 0
    %1140 = vmatprep.subr.bf16.mxu0 0
    %1141 = vmatpush1.bf16.xpose.msra.mxu0 %v1124
    %1142 = vmatprep.subr.bf16.mxu0 0
    %1143 = vmatpush2.bf16.xpose.msra.mxu0 0
    %1144 = vmatprep.subr.bf16.mxu0 0
    %1145 = vmatpush2.bf16.xpose.msra.mxu0 0
    %1146 = vmatprep.subr.bf16.mxu0 0
    %1147 = vmatpush2.bf16.xpose.msra.mxu0 0
    %1148 = vmatprep.subr.bf16.mxu0 0
    %1149 = vmatpush2.bf16.xpose.msra.mxu0 0
    %1150 = vmatprep.subr.bf16.mxu0 0
    %1151 = vmatpush2.bf16.xpose.msra.mxu0 0
    %1152 = vmatprep.subr.bf16.mxu0 0
    %1153 = vmatpush2.bf16.xpose.msra.mxu0 0
    %1154 = vmatprep.subr.bf16.mxu0 0
    %1155 = vmatpush2.bf16.xpose.msra.mxu0 0
    %1156 = vmatprep.subr.bf16.mxu0 0
    %1157 = vmatpush2.bf16.xpose.msra.mxu0 0
    %1158 = vmatprep.mubr.bf16.mxu0 0
    %1159 = vmatmul.mubr.bf16.gmra.mxu0 %v1121
    %v1160 = vpop.f32.mrf.mxu0
    %v1161 = vadd.f32 0.0, %v1160
    %v1162 = vpop.f32.mrf.mxu0
    %v1163 = vpop.f32.mrf.mxu0
    %v1164 = vadd.f32 0.0, %v1163
    %v1165 = vpop.f32.mrf.mxu0
    %1166 = vdwg.mxu0
    %1168 = vrot.lane.b32.xlu0 %v864, 112
    %v1169 = vpop.permute.xlu0 %1168
    %v1171 = vsel %vm869, %v864, 0
    %v1174 = vsel %vm869, %v1169, 0
    %1176 = vmatprep.subr.bf16.mxu0 0
    %1177 = vmatpush1.bf16.xpose.msra.mxu0 0
    %1178 = vmatprep.subr.bf16.mxu0 0
    %1179 = vmatpush1.bf16.xpose.msra.mxu0 0
    %1180 = vmatprep.subr.bf16.mxu0 0
    %1181 = vmatpush1.bf16.xpose.msra.mxu0 0
    %1182 = vmatprep.subr.bf16.mxu0 0
    %1183 = vmatpush1.bf16.xpose.msra.mxu0 0
    %1184 = vmatprep.subr.bf16.mxu0 0
    %1185 = vmatpush1.bf16.xpose.msra.mxu0 0
    %1186 = vmatprep.subr.bf16.mxu0 0
    %1187 = vmatpush1.bf16.xpose.msra.mxu0 0
    %1188 = vmatprep.subr.bf16.mxu0 0
    %1189 = vmatpush1.bf16.xpose.msra.mxu0 0
    %1190 = vmatprep.subr.bf16.mxu0 0
    %1191 = vmatpush1.bf16.xpose.msra.mxu0 %v1174
    %1192 = vmatprep.subr.bf16.mxu0 0
    %1193 = vmatpush2.bf16.xpose.msra.mxu0 0
    %1194 = vmatprep.subr.bf16.mxu0 0
    %1195 = vmatpush2.bf16.xpose.msra.mxu0 0
    %1196 = vmatprep.subr.bf16.mxu0 0
    %1197 = vmatpush2.bf16.xpose.msra.mxu0 0
    %1198 = vmatprep.subr.bf16.mxu0 0
    %1199 = vmatpush2.bf16.xpose.msra.mxu0 0
    %1200 = vmatprep.subr.bf16.mxu0 0
    %1201 = vmatpush2.bf16.xpose.msra.mxu0 0
    %1202 = vmatprep.subr.bf16.mxu0 0
    %1203 = vmatpush2.bf16.xpose.msra.mxu0 0
    %1204 = vmatprep.subr.bf16.mxu0 0
    %1205 = vmatpush2.bf16.xpose.msra.mxu0 0
    %1206 = vmatprep.subr.bf16.mxu0 0
    %1207 = vmatpush2.bf16.xpose.msra.mxu0 0
    %1208 = vmatprep.mubr.bf16.mxu0 0
    %1209 = vmatmul.mubr.bf16.gmra.mxu0 %v1171
    %v1210 = vpop.f32.mrf.mxu0
    %v1211 = vadd.f32 0.0, %v1210
    %v1212 = vpop.f32.mrf.mxu0
    %v1213 = vpop.f32.mrf.mxu0
    %v1214 = vadd.f32 0.0, %v1213
    %v1215 = vpop.f32.mrf.mxu0
    %1216 = vdwg.mxu0
    %1218 = vrot.lane.b32.xlu0 %v865, 112
    %v1219 = vpop.permute.xlu0 %1218
    %v1221 = vsel %vm869, %v865, 0
    %v1224 = vsel %vm869, %v1219, 0
    %1226 = vmatprep.subr.bf16.mxu0 0
    %1227 = vmatpush1.bf16.xpose.msra.mxu0 0
    %1228 = vmatprep.subr.bf16.mxu0 0
    %1229 = vmatpush1.bf16.xpose.msra.mxu0 0
    %1230 = vmatprep.subr.bf16.mxu0 0
    %1231 = vmatpush1.bf16.xpose.msra.mxu0 0
    %1232 = vmatprep.subr.bf16.mxu0 0
    %1233 = vmatpush1.bf16.xpose.msra.mxu0 0
    %1234 = vmatprep.subr.bf16.mxu0 0
    %1235 = vmatpush1.bf16.xpose.msra.mxu0 0
    %1236 = vmatprep.subr.bf16.mxu0 0
    %1237 = vmatpush1.bf16.xpose.msra.mxu0 0
    %1238 = vmatprep.subr.bf16.mxu0 0
    %1239 = vmatpush1.bf16.xpose.msra.mxu0 0
    %1240 = vmatprep.subr.bf16.mxu0 0
    %1241 = vmatpush1.bf16.xpose.msra.mxu0 %v1224
    %1242 = vmatprep.subr.bf16.mxu0 0
    %1243 = vmatpush2.bf16.xpose.msra.mxu0 0
    %1244 = vmatprep.subr.bf16.mxu0 0
    %1245 = vmatpush2.bf16.xpose.msra.mxu0 0
    %1246 = vmatprep.subr.bf16.mxu0 0
    %1247 = vmatpush2.bf16.xpose.msra.mxu0 0
    %1248 = vmatprep.subr.bf16.mxu0 0
    %1249 = vmatpush2.bf16.xpose.msra.mxu0 0
    %1250 = vmatprep.subr.bf16.mxu0 0
    %1251 = vmatpush2.bf16.xpose.msra.mxu0 0
    %1252 = vmatprep.subr.bf16.mxu0 0
    %1253 = vmatpush2.bf16.xpose.msra.mxu0 0
    %1254 = vmatprep.subr.bf16.mxu0 0
    %1255 = vmatpush2.bf16.xpose.msra.mxu0 0
    %1256 = vmatprep.subr.bf16.mxu0 0
    %1257 = vmatpush2.bf16.xpose.msra.mxu0 0
    %1258 = vmatprep.mubr.bf16.mxu0 0
    %1259 = vmatmul.mubr.bf16.gmra.mxu0 %v1221
    %v1260 = vpop.f32.mrf.mxu0
    %v1261 = vadd.f32 0.0, %v1260
    %v1262 = vpop.f32.mrf.mxu0
    %v1263 = vpop.f32.mrf.mxu0
    %v1264 = vadd.f32 0.0, %v1263
    %v1265 = vpop.f32.mrf.mxu0
    %1266 = vdwg.mxu0
    %v1267 = vsel %vm869, %v911, -inf
    %1268 = vmax.xlane.f32.xlu0 %v1267
    %v1269 = vpop.xlane.xlu0 %1268
    %v1270 = vsel %vm869, %v914, -inf
    %1271 = vmax.xlane.f32.xlu0 %v1270
    %v1272 = vpop.xlane.xlu0 %1271
    %v1273 = vsel %vm869, %v961, -inf
    %1274 = vmax.xlane.f32.xlu0 %v1273
    %v1275 = vpop.xlane.xlu0 %1274
    %v1276 = vsel %vm869, %v964, -inf
    %1277 = vmax.xlane.f32.xlu0 %v1276
    %v1278 = vpop.xlane.xlu0 %1277
    %v1279 = vsel %vm869, %v1011, -inf
    %1280 = vmax.xlane.f32.xlu0 %v1279
    %v1281 = vpop.xlane.xlu0 %1280
    %v1282 = vsel %vm869, %v1014, -inf
    %1283 = vmax.xlane.f32.xlu0 %v1282
    %v1284 = vpop.xlane.xlu0 %1283
    %v1285 = vsel %vm869, %v1061, -inf
    %1286 = vmax.xlane.f32.xlu0 %v1285
    %v1287 = vpop.xlane.xlu0 %1286
    %v1288 = vsel %vm869, %v1064, -inf
    %1289 = vmax.xlane.f32.xlu0 %v1288
    %v1290 = vpop.xlane.xlu0 %1289
    %v1291 = vsel %vm869, %v1111, -inf
    %1292 = vmax.xlane.f32.xlu0 %v1291
    %v1293 = vpop.xlane.xlu0 %1292
    %v1294 = vsel %vm869, %v1114, -inf
    %1295 = vmax.xlane.f32.xlu0 %v1294
    %v1296 = vpop.xlane.xlu0 %1295
    %v1297 = vsel %vm869, %v1161, -inf
    %1298 = vmax.xlane.f32.xlu0 %v1297
    %v1299 = vpop.xlane.xlu0 %1298
    %v1300 = vsel %vm869, %v1164, -inf
    %1301 = vmax.xlane.f32.xlu0 %v1300
    %v1302 = vpop.xlane.xlu0 %1301
    %v1303 = vsel %vm869, %v1211, -inf
    %1304 = vmax.xlane.f32.xlu0 %v1303
    %v1305 = vpop.xlane.xlu0 %1304
    %v1306 = vsel %vm869, %v1214, -inf
    %1307 = vmax.xlane.f32.xlu0 %v1306
    %v1308 = vpop.xlane.xlu0 %1307
    %v1309 = vsel %vm869, %v1261, -inf
    %1310 = vmax.xlane.f32.xlu0 %v1309
    %v1311 = vpop.xlane.xlu0 %1310
    %v1312 = vsel %vm869, %v1264, -inf
    %1313 = vmax.xlane.f32.xlu0 %v1312
    %v1314 = vpop.xlane.xlu0 %1313
    %v1315 = vsub.f32 %v911, %v1269
    %v1316 = vsub.f32 %v914, %v1272
    %v1317 = vsub.f32 %v961, %v1275
    %v1318 = vsub.f32 %v964, %v1278
    %v1319 = vsub.f32 %v1011, %v1281
    %v1320 = vsub.f32 %v1014, %v1284
    %v1321 = vsub.f32 %v1061, %v1287
    %v1322 = vsub.f32 %v1064, %v1290
    %v1323 = vsub.f32 %v1111, %v1293
    %v1324 = vsub.f32 %v1114, %v1296
    %v1325 = vsub.f32 %v1161, %v1299
    %v1326 = vsub.f32 %v1164, %v1302
    %v1327 = vsub.f32 %v1211, %v1305
    %v1328 = vsub.f32 %v1214, %v1308
    %v1329 = vsub.f32 %v1261, %v1311
    %v1330 = vsub.f32 %v1264, %v1314
    %v1331 = vmul.f32 %v1315, 1.442695
    %v1332 = vpow.pop %v1331
    %v1333 = vmul.f32 %v1316, 1.442695
    %v1334 = vpow.pop %v1333
    %v1335 = vmul.f32 %v1317, 1.442695
    %v1336 = vpow.pop %v1335
    %v1337 = vmul.f32 %v1318, 1.442695
    %v1338 = vpow.pop %v1337
    %v1339 = vmul.f32 %v1319, 1.442695
    %v1340 = vpow.pop %v1339
    %v1341 = vmul.f32 %v1320, 1.442695
    %v1342 = vpow.pop %v1341
    %v1343 = vmul.f32 %v1321, 1.442695
    %v1344 = vpow.pop %v1343
    %v1345 = vmul.f32 %v1322, 1.442695
    %v1346 = vpow.pop %v1345
    %v1347 = vmul.f32 %v1323, 1.442695
    %v1348 = vpow.pop %v1347
    %v1349 = vmul.f32 %v1324, 1.442695
    %v1350 = vpow.pop %v1349
    %v1351 = vmul.f32 %v1325, 1.442695
    %v1352 = vpow.pop %v1351
    %v1353 = vmul.f32 %v1326, 1.442695
    %v1354 = vpow.pop %v1353
    %v1355 = vmul.f32 %v1327, 1.442695
    %v1356 = vpow.pop %v1355
    %v1357 = vmul.f32 %v1328, 1.442695
    %v1358 = vpow.pop %v1357
    %v1359 = vmul.f32 %v1329, 1.442695
    %v1360 = vpow.pop %v1359
    %v1361 = vmul.f32 %v1330, 1.442695
    %v1362 = vpow.pop %v1361
    %v1363 = vsel %vm869, %v1332, 0.0
    %1364 = vadd.xlane.f32.xlu0 %v1363
    %v1365 = vpop.xlane.xlu0 %1364
    %v1366 = vsel %vm869, %v1334, 0.0
    %1367 = vadd.xlane.f32.xlu0 %v1366
    %v1368 = vpop.xlane.xlu0 %1367
    %v1369 = vsel %vm869, %v1336, 0.0
    %1370 = vadd.xlane.f32.xlu0 %v1369
    %v1371 = vpop.xlane.xlu0 %1370
    %v1372 = vsel %vm869, %v1338, 0.0
    %1373 = vadd.xlane.f32.xlu0 %v1372
    %v1374 = vpop.xlane.xlu0 %1373
    %v1375 = vsel %vm869, %v1340, 0.0
    %1376 = vadd.xlane.f32.xlu0 %v1375
    %v1377 = vpop.xlane.xlu0 %1376
    %v1378 = vsel %vm869, %v1342, 0.0
    %1379 = vadd.xlane.f32.xlu0 %v1378
    %v1380 = vpop.xlane.xlu0 %1379
    %v1381 = vsel %vm869, %v1344, 0.0
    %1382 = vadd.xlane.f32.xlu0 %v1381
    %v1383 = vpop.xlane.xlu0 %1382
    %v1384 = vsel %vm869, %v1346, 0.0
    %1385 = vadd.xlane.f32.xlu0 %v1384
    %v1386 = vpop.xlane.xlu0 %1385
    %v1387 = vsel %vm869, %v1348, 0.0
    %1388 = vadd.xlane.f32.xlu0 %v1387
    %v1389 = vpop.xlane.xlu0 %1388
    %v1390 = vsel %vm869, %v1350, 0.0
    %1391 = vadd.xlane.f32.xlu0 %v1390
    %v1392 = vpop.xlane.xlu0 %1391
    %v1393 = vsel %vm869, %v1352, 0.0
    %1394 = vadd.xlane.f32.xlu0 %v1393
    %v1395 = vpop.xlane.xlu0 %1394
    %v1396 = vsel %vm869, %v1354, 0.0
    %1397 = vadd.xlane.f32.xlu0 %v1396
    %v1398 = vpop.xlane.xlu0 %1397
    %v1399 = vsel %vm869, %v1356, 0.0
    %1400 = vadd.xlane.f32.xlu0 %v1399
    %v1401 = vpop.xlane.xlu0 %1400
    %v1402 = vsel %vm869, %v1358, 0.0
    %1403 = vadd.xlane.f32.xlu0 %v1402
    %v1404 = vpop.xlane.xlu0 %1403
    %v1405 = vsel %vm869, %v1360, 0.0
    %1406 = vadd.xlane.f32.xlu0 %v1405
    %v1407 = vpop.xlane.xlu0 %1406
    %v1408 = vsel %vm869, %v1362, 0.0
    %1409 = vadd.xlane.f32.xlu0 %v1408
    %v1410 = vpop.xlane.xlu0 %1409
    %v1411 = vrcp.pop %v1365
    %v1412 = vrcp.pop %v1368
    %v1413 = vrcp.pop %v1371
    %v1414 = vrcp.pop %v1374
    %v1415 = vrcp.pop %v1377
    %v1416 = vrcp.pop %v1380
    %v1417 = vrcp.pop %v1383
    %v1418 = vrcp.pop %v1386
    %v1419 = vrcp.pop %v1389
    %v1420 = vrcp.pop %v1392
    %v1421 = vrcp.pop %v1395
    %v1422 = vrcp.pop %v1398
    %v1423 = vrcp.pop %v1401
    %v1424 = vrcp.pop %v1404
    %v1425 = vrcp.pop %v1407
    %v1426 = vrcp.pop %v1410
    %v1427 = vmul.f32 %v1332, %v1411
    %v1428 = vmul.f32 %v1334, %v1412
    %v1429 = vmul.f32 %v1336, %v1413
    %v1430 = vmul.f32 %v1338, %v1414
    %v1431 = vmul.f32 %v1340, %v1415
    %v1432 = vmul.f32 %v1342, %v1416
    %v1433 = vmul.f32 %v1344, %v1417
    %v1434 = vmul.f32 %v1346, %v1418
    %v1435 = vmul.f32 %v1348, %v1419
    %v1436 = vmul.f32 %v1350, %v1420
    %v1437 = vmul.f32 %v1352, %v1421
    %v1438 = vmul.f32 %v1354, %v1422
    %v1439 = vmul.f32 %v1356, %v1423
    %v1440 = vmul.f32 %v1358, %v1424
    %v1441 = vmul.f32 %v1360, %v1425
    %v1442 = vmul.f32 %v1362, %v1426
    %v1443 = vpack.c.bf16 %v1428, %v1427
    %v1444 = vpack.c.bf16 %v1430, %v1429
    %v1445 = vpack.c.bf16 %v1432, %v1431
    %v1446 = vpack.c.bf16 %v1434, %v1433
    %v1447 = vpack.c.bf16 %v1436, %v1435
    %v1448 = vpack.c.bf16 %v1438, %v1437
    %v1449 = vpack.c.bf16 %v1440, %v1439
    %v1450 = vpack.c.bf16 %v1442, %v1441
    %1451 = vrot.lane.b32.xlu0 %v858, 96
    %v1452 = vpop.permute.xlu0 %1451
    %v1455 = vsel %vm869, %v1443, 0
    %1457 = vmatprep.subr.bf16.mxu0 0
    %1458 = vmatpush1.bf16.msra.mxu0 0
    %1459 = vmatprep.subr.bf16.mxu0 0
    %1460 = vmatpush1.bf16.msra.mxu0 0
    %1461 = vmatprep.subr.bf16.mxu0 0
    %1462 = vmatpush1.bf16.msra.mxu0 0
    %1463 = vmatprep.subr.bf16.mxu0 0
    %1464 = vmatpush1.bf16.msra.mxu0 0
    %1465 = vmatprep.subr.bf16.mxu0 0
    %1466 = vmatpush1.bf16.msra.mxu0 0
    %1467 = vmatprep.subr.bf16.mxu0 0
    %1468 = vmatpush1.bf16.msra.mxu0 0
    %1469 = vmatprep.subr.bf16.mxu0 0
    %1470 = vmatpush1.bf16.msra.mxu0 0
    %1471 = vmatprep.subr.bf16.mxu0 0
    %1472 = vmatpush1.bf16.msra.mxu0 %v1452
    %1473 = vmatprep.subr.bf16.mxu0 0
    %1474 = vmatpush2.bf16.msra.mxu0 0
    %1475 = vmatprep.subr.bf16.mxu0 0
    %1476 = vmatpush2.bf16.msra.mxu0 0
    %1477 = vmatprep.subr.bf16.mxu0 0
    %1478 = vmatpush2.bf16.msra.mxu0 0
    %1479 = vmatprep.subr.bf16.mxu0 0
    %1480 = vmatpush2.bf16.msra.mxu0 0
    %1481 = vmatprep.subr.bf16.mxu0 0
    %1482 = vmatpush2.bf16.msra.mxu0 0
    %1483 = vmatprep.subr.bf16.mxu0 0
    %1484 = vmatpush2.bf16.msra.mxu0 0
    %1485 = vmatprep.subr.bf16.mxu0 0
    %1486 = vmatpush2.bf16.msra.mxu0 0
    %1487 = vmatprep.subr.bf16.mxu0 0
    %1488 = vmatpush2.bf16.msra.mxu0 0
    %1489 = vmatprep.mubr.bf16.mxu0 0
    %1490 = vmatmul.mubr.bf16.gmra.mxu0 %v1455
    %v1491 = vpop.f32.mrf.mxu0
    %v1492 = vadd.f32 0.0, %v1491
    %v1493 = vpop.f32.mrf.mxu0
    %v1494 = vpop.f32.mrf.mxu0
    %v1495 = vadd.f32 0.0, %v1494
    %v1496 = vpop.f32.mrf.mxu0
    %1497 = vdwg.mxu0
    %1498 = vrot.lane.b32.xlu0 %v859, 96
    %v1499 = vpop.permute.xlu0 %1498
    %v1502 = vsel %vm869, %v1444, 0
    %1504 = vmatprep.subr.bf16.mxu0 0
    %1505 = vmatpush1.bf16.msra.mxu0 0
    %1506 = vmatprep.subr.bf16.mxu0 0
    %1507 = vmatpush1.bf16.msra.mxu0 0
    %1508 = vmatprep.subr.bf16.mxu0 0
    %1509 = vmatpush1.bf16.msra.mxu0 0
    %1510 = vmatprep.subr.bf16.mxu0 0
    %1511 = vmatpush1.bf16.msra.mxu0 0
    %1512 = vmatprep.subr.bf16.mxu0 0
    %1513 = vmatpush1.bf16.msra.mxu0 0
    %1514 = vmatprep.subr.bf16.mxu0 0
    %1515 = vmatpush1.bf16.msra.mxu0 0
    %1516 = vmatprep.subr.bf16.mxu0 0
    %1517 = vmatpush1.bf16.msra.mxu0 0
    %1518 = vmatprep.subr.bf16.mxu0 0
    %1519 = vmatpush1.bf16.msra.mxu0 %v1499
    %1520 = vmatprep.subr.bf16.mxu0 0
    %1521 = vmatpush2.bf16.msra.mxu0 0
    %1522 = vmatprep.subr.bf16.mxu0 0
    %1523 = vmatpush2.bf16.msra.mxu0 0
    %1524 = vmatprep.subr.bf16.mxu0 0
    %1525 = vmatpush2.bf16.msra.mxu0 0
    %1526 = vmatprep.subr.bf16.mxu0 0
    %1527 = vmatpush2.bf16.msra.mxu0 0
    %1528 = vmatprep.subr.bf16.mxu0 0
    %1529 = vmatpush2.bf16.msra.mxu0 0
    %1530 = vmatprep.subr.bf16.mxu0 0
    %1531 = vmatpush2.bf16.msra.mxu0 0
    %1532 = vmatprep.subr.bf16.mxu0 0
    %1533 = vmatpush2.bf16.msra.mxu0 0
    %1534 = vmatprep.subr.bf16.mxu0 0
    %1535 = vmatpush2.bf16.msra.mxu0 0
    %1536 = vmatprep.mubr.bf16.mxu0 0
    %1537 = vmatmul.mubr.bf16.gmra.mxu0 %v1502
    %v1538 = vpop.f32.mrf.mxu0
    %v1539 = vadd.f32 0.0, %v1538
    %v1540 = vpop.f32.mrf.mxu0
    %v1541 = vpop.f32.mrf.mxu0
    %v1542 = vadd.f32 0.0, %v1541
    %v1543 = vpop.f32.mrf.mxu0
    %1544 = vdwg.mxu0
    %1545 = vrot.lane.b32.xlu0 %v860, 96
    %v1546 = vpop.permute.xlu0 %1545
    %v1549 = vsel %vm869, %v1445, 0
    %1551 = vmatprep.subr.bf16.mxu0 0
    %1552 = vmatpush1.bf16.msra.mxu0 0
    %1553 = vmatprep.subr.bf16.mxu0 0
    %1554 = vmatpush1.bf16.msra.mxu0 0
    %1555 = vmatprep.subr.bf16.mxu0 0
    %1556 = vmatpush1.bf16.msra.mxu0 0
    %1557 = vmatprep.subr.bf16.mxu0 0
    %1558 = vmatpush1.bf16.msra.mxu0 0
    %1559 = vmatprep.subr.bf16.mxu0 0
    %1560 = vmatpush1.bf16.msra.mxu0 0
    %1561 = vmatprep.subr.bf16.mxu0 0
    %1562 = vmatpush1.bf16.msra.mxu0 0
    %1563 = vmatprep.subr.bf16.mxu0 0
    %1564 = vmatpush1.bf16.msra.mxu0 0
    %1565 = vmatprep.subr.bf16.mxu0 0
    %1566 = vmatpush1.bf16.msra.mxu0 %v1546
    %1567 = vmatprep.subr.bf16.mxu0 0
    %1568 = vmatpush2.bf16.msra.mxu0 0
    %1569 = vmatprep.subr.bf16.mxu0 0
    %1570 = vmatpush2.bf16.msra.mxu0 0
    %1571 = vmatprep.subr.bf16.mxu0 0
    %1572 = vmatpush2.bf16.msra.mxu0 0
    %1573 = vmatprep.subr.bf16.mxu0 0
    %1574 = vmatpush2.bf16.msra.mxu0 0
    %1575 = vmatprep.subr.bf16.mxu0 0
    %1576 = vmatpush2.bf16.msra.mxu0 0
    %1577 = vmatprep.subr.bf16.mxu0 0
    %1578 = vmatpush2.bf16.msra.mxu0 0
    %1579 = vmatprep.subr.bf16.mxu0 0
    %1580 = vmatpush2.bf16.msra.mxu0 0
    %1581 = vmatprep.subr.bf16.mxu0 0
    %1582 = vmatpush2.bf16.msra.mxu0 0
    %1583 = vmatprep.mubr.bf16.mxu0 0
    %1584 = vmatmul.mubr.bf16.gmra.mxu0 %v1549
    %v1585 = vpop.f32.mrf.mxu0
    %v1586 = vadd.f32 0.0, %v1585
    %v1587 = vpop.f32.mrf.mxu0
    %v1588 = vpop.f32.mrf.mxu0
    %v1589 = vadd.f32 0.0, %v1588
    %v1590 = vpop.f32.mrf.mxu0
    %1591 = vdwg.mxu0
    %1592 = vrot.lane.b32.xlu0 %v861, 96
    %v1593 = vpop.permute.xlu0 %1592
    %v1596 = vsel %vm869, %v1446, 0
    %1598 = vmatprep.subr.bf16.mxu0 0
    %1599 = vmatpush1.bf16.msra.mxu0 0
    %1600 = vmatprep.subr.bf16.mxu0 0
    %1601 = vmatpush1.bf16.msra.mxu0 0
    %1602 = vmatprep.subr.bf16.mxu0 0
    %1603 = vmatpush1.bf16.msra.mxu0 0
    %1604 = vmatprep.subr.bf16.mxu0 0
    %1605 = vmatpush1.bf16.msra.mxu0 0
    %1606 = vmatprep.subr.bf16.mxu0 0
    %1607 = vmatpush1.bf16.msra.mxu0 0
    %1608 = vmatprep.subr.bf16.mxu0 0
    %1609 = vmatpush1.bf16.msra.mxu0 0
    %1610 = vmatprep.subr.bf16.mxu0 0
    %1611 = vmatpush1.bf16.msra.mxu0 0
    %1612 = vmatprep.subr.bf16.mxu0 0
    %1613 = vmatpush1.bf16.msra.mxu0 %v1593
    %1614 = vmatprep.subr.bf16.mxu0 0
    %1615 = vmatpush2.bf16.msra.mxu0 0
    %1616 = vmatprep.subr.bf16.mxu0 0
    %1617 = vmatpush2.bf16.msra.mxu0 0
    %1618 = vmatprep.subr.bf16.mxu0 0
    %1619 = vmatpush2.bf16.msra.mxu0 0
    %1620 = vmatprep.subr.bf16.mxu0 0
    %1621 = vmatpush2.bf16.msra.mxu0 0
    %1622 = vmatprep.subr.bf16.mxu0 0
    %1623 = vmatpush2.bf16.msra.mxu0 0
    %1624 = vmatprep.subr.bf16.mxu0 0
    %1625 = vmatpush2.bf16.msra.mxu0 0
    %1626 = vmatprep.subr.bf16.mxu0 0
    %1627 = vmatpush2.bf16.msra.mxu0 0
    %1628 = vmatprep.subr.bf16.mxu0 0
    %1629 = vmatpush2.bf16.msra.mxu0 0
    %1630 = vmatprep.mubr.bf16.mxu0 0
    %1631 = vmatmul.mubr.bf16.gmra.mxu0 %v1596
    %v1632 = vpop.f32.mrf.mxu0
    %v1633 = vadd.f32 0.0, %v1632
    %v1634 = vpop.f32.mrf.mxu0
    %v1635 = vpop.f32.mrf.mxu0
    %v1636 = vadd.f32 0.0, %v1635
    %v1637 = vpop.f32.mrf.mxu0
    %1638 = vdwg.mxu0
    %1639 = vrot.lane.b32.xlu0 %v862, 96
    %v1640 = vpop.permute.xlu0 %1639
    %v1643 = vsel %vm869, %v1447, 0
    %1645 = vmatprep.subr.bf16.mxu0 0
    %1646 = vmatpush1.bf16.msra.mxu0 0
    %1647 = vmatprep.subr.bf16.mxu0 0
    %1648 = vmatpush1.bf16.msra.mxu0 0
    %1649 = vmatprep.subr.bf16.mxu0 0
    %1650 = vmatpush1.bf16.msra.mxu0 0
    %1651 = vmatprep.subr.bf16.mxu0 0
    %1652 = vmatpush1.bf16.msra.mxu0 0
    %1653 = vmatprep.subr.bf16.mxu0 0
    %1654 = vmatpush1.bf16.msra.mxu0 0
    %1655 = vmatprep.subr.bf16.mxu0 0
    %1656 = vmatpush1.bf16.msra.mxu0 0
    %1657 = vmatprep.subr.bf16.mxu0 0
    %1658 = vmatpush1.bf16.msra.mxu0 0
    %1659 = vmatprep.subr.bf16.mxu0 0
    %1660 = vmatpush1.bf16.msra.mxu0 %v1640
    %1661 = vmatprep.subr.bf16.mxu0 0
    %1662 = vmatpush2.bf16.msra.mxu0 0
    %1663 = vmatprep.subr.bf16.mxu0 0
    %1664 = vmatpush2.bf16.msra.mxu0 0
    %1665 = vmatprep.subr.bf16.mxu0 0
    %1666 = vmatpush2.bf16.msra.mxu0 0
    %1667 = vmatprep.subr.bf16.mxu0 0
    %1668 = vmatpush2.bf16.msra.mxu0 0
    %1669 = vmatprep.subr.bf16.mxu0 0
    %1670 = vmatpush2.bf16.msra.mxu0 0
    %1671 = vmatprep.subr.bf16.mxu0 0
    %1672 = vmatpush2.bf16.msra.mxu0 0
    %1673 = vmatprep.subr.bf16.mxu0 0
    %1674 = vmatpush2.bf16.msra.mxu0 0
    %1675 = vmatprep.subr.bf16.mxu0 0
    %1676 = vmatpush2.bf16.msra.mxu0 0
    %1677 = vmatprep.mubr.bf16.mxu0 0
    %1678 = vmatmul.mubr.bf16.gmra.mxu0 %v1643
    %v1679 = vpop.f32.mrf.mxu0
    %v1680 = vadd.f32 0.0, %v1679
    %v1681 = vpop.f32.mrf.mxu0
    %v1682 = vpop.f32.mrf.mxu0
    %v1683 = vadd.f32 0.0, %v1682
    %v1684 = vpop.f32.mrf.mxu0
    %1685 = vdwg.mxu0
    %1686 = vrot.lane.b32.xlu0 %v863, 96
    %v1687 = vpop.permute.xlu0 %1686
    %v1690 = vsel %vm869, %v1448, 0
    %1692 = vmatprep.subr.bf16.mxu0 0
    %1693 = vmatpush1.bf16.msra.mxu0 0
    %1694 = vmatprep.subr.bf16.mxu0 0
    %1695 = vmatpush1.bf16.msra.mxu0 0
    %1696 = vmatprep.subr.bf16.mxu0 0
    %1697 = vmatpush1.bf16.msra.mxu0 0
    %1698 = vmatprep.subr.bf16.mxu0 0
    %1699 = vmatpush1.bf16.msra.mxu0 0
    %1700 = vmatprep.subr.bf16.mxu0 0
    %1701 = vmatpush1.bf16.msra.mxu0 0
    %1702 = vmatprep.subr.bf16.mxu0 0
    %1703 = vmatpush1.bf16.msra.mxu0 0
    %1704 = vmatprep.subr.bf16.mxu0 0
    %1705 = vmatpush1.bf16.msra.mxu0 0
    %1706 = vmatprep.subr.bf16.mxu0 0
    %1707 = vmatpush1.bf16.msra.mxu0 %v1687
    %1708 = vmatprep.subr.bf16.mxu0 0
    %1709 = vmatpush2.bf16.msra.mxu0 0
    %1710 = vmatprep.subr.bf16.mxu0 0
    %1711 = vmatpush2.bf16.msra.mxu0 0
    %1712 = vmatprep.subr.bf16.mxu0 0
    %1713 = vmatpush2.bf16.msra.mxu0 0
    %1714 = vmatprep.subr.bf16.mxu0 0
    %1715 = vmatpush2.bf16.msra.mxu0 0
    %1716 = vmatprep.subr.bf16.mxu0 0
    %1717 = vmatpush2.bf16.msra.mxu0 0
    %1718 = vmatprep.subr.bf16.mxu0 0
    %1719 = vmatpush2.bf16.msra.mxu0 0
    %1720 = vmatprep.subr.bf16.mxu0 0
    %1721 = vmatpush2.bf16.msra.mxu0 0
    %1722 = vmatprep.subr.bf16.mxu0 0
    %1723 = vmatpush2.bf16.msra.mxu0 0
    %1724 = vmatprep.mubr.bf16.mxu0 0
    %1725 = vmatmul.mubr.bf16.gmra.mxu0 %v1690
    %v1726 = vpop.f32.mrf.mxu0
    %v1727 = vadd.f32 0.0, %v1726
    %v1728 = vpop.f32.mrf.mxu0
    %v1729 = vpop.f32.mrf.mxu0
    %v1730 = vadd.f32 0.0, %v1729
    %v1731 = vpop.f32.mrf.mxu0
    %1732 = vdwg.mxu0
    %1733 = vrot.lane.b32.xlu0 %v864, 96
    %v1734 = vpop.permute.xlu0 %1733
    %v1737 = vsel %vm869, %v1449, 0
    %1739 = vmatprep.subr.bf16.mxu0 0
    %1740 = vmatpush1.bf16.msra.mxu0 0
    %1741 = vmatprep.subr.bf16.mxu0 0
    %1742 = vmatpush1.bf16.msra.mxu0 0
    %1743 = vmatprep.subr.bf16.mxu0 0
    %1744 = vmatpush1.bf16.msra.mxu0 0
    %1745 = vmatprep.subr.bf16.mxu0 0
    %1746 = vmatpush1.bf16.msra.mxu0 0
    %1747 = vmatprep.subr.bf16.mxu0 0
    %1748 = vmatpush1.bf16.msra.mxu0 0
    %1749 = vmatprep.subr.bf16.mxu0 0
    %1750 = vmatpush1.bf16.msra.mxu0 0
    %1751 = vmatprep.subr.bf16.mxu0 0
    %1752 = vmatpush1.bf16.msra.mxu0 0
    %1753 = vmatprep.subr.bf16.mxu0 0
    %1754 = vmatpush1.bf16.msra.mxu0 %v1734
    %1755 = vmatprep.subr.bf16.mxu0 0
    %1756 = vmatpush2.bf16.msra.mxu0 0
    %1757 = vmatprep.subr.bf16.mxu0 0
    %1758 = vmatpush2.bf16.msra.mxu0 0
    %1759 = vmatprep.subr.bf16.mxu0 0
    %1760 = vmatpush2.bf16.msra.mxu0 0
    %1761 = vmatprep.subr.bf16.mxu0 0
    %1762 = vmatpush2.bf16.msra.mxu0 0
    %1763 = vmatprep.subr.bf16.mxu0 0
    %1764 = vmatpush2.bf16.msra.mxu0 0
    %1765 = vmatprep.subr.bf16.mxu0 0
    %1766 = vmatpush2.bf16.msra.mxu0 0
    %1767 = vmatprep.subr.bf16.mxu0 0
    %1768 = vmatpush2.bf16.msra.mxu0 0
    %1769 = vmatprep.subr.bf16.mxu0 0
    %1770 = vmatpush2.bf16.msra.mxu0 0
    %1771 = vmatprep.mubr.bf16.mxu0 0
    %1772 = vmatmul.mubr.bf16.gmra.mxu0 %v1737
    %v1773 = vpop.f32.mrf.mxu0
    %v1774 = vadd.f32 0.0, %v1773
    %v1775 = vpop.f32.mrf.mxu0
    %v1776 = vpop.f32.mrf.mxu0
    %v1777 = vadd.f32 0.0, %v1776
    %v1778 = vpop.f32.mrf.mxu0
    %1779 = vdwg.mxu0
    %1780 = vrot.lane.b32.xlu0 %v865, 96
    %v1781 = vpop.permute.xlu0 %1780
    %v1784 = vsel %vm869, %v1450, 0
    %1786 = vmatprep.subr.bf16.mxu0 0
    %1787 = vmatpush1.bf16.msra.mxu0 0
    %1788 = vmatprep.subr.bf16.mxu0 0
    %1789 = vmatpush1.bf16.msra.mxu0 0
    %1790 = vmatprep.subr.bf16.mxu0 0
    %1791 = vmatpush1.bf16.msra.mxu0 0
    %1792 = vmatprep.subr.bf16.mxu0 0
    %1793 = vmatpush1.bf16.msra.mxu0 0
    %1794 = vmatprep.subr.bf16.mxu0 0
    %1795 = vmatpush1.bf16.msra.mxu0 0
    %1796 = vmatprep.subr.bf16.mxu0 0
    %1797 = vmatpush1.bf16.msra.mxu0 0
    %1798 = vmatprep.subr.bf16.mxu0 0
    %1799 = vmatpush1.bf16.msra.mxu0 0
    %1800 = vmatprep.subr.bf16.mxu0 0
    %1801 = vmatpush1.bf16.msra.mxu0 %v1781
    %1802 = vmatprep.subr.bf16.mxu0 0
    %1803 = vmatpush2.bf16.msra.mxu0 0
    %1804 = vmatprep.subr.bf16.mxu0 0
    %1805 = vmatpush2.bf16.msra.mxu0 0
    %1806 = vmatprep.subr.bf16.mxu0 0
    %1807 = vmatpush2.bf16.msra.mxu0 0
    %1808 = vmatprep.subr.bf16.mxu0 0
    %1809 = vmatpush2.bf16.msra.mxu0 0
    %1810 = vmatprep.subr.bf16.mxu0 0
    %1811 = vmatpush2.bf16.msra.mxu0 0
    %1812 = vmatprep.subr.bf16.mxu0 0
    %1813 = vmatpush2.bf16.msra.mxu0 0
    %1814 = vmatprep.subr.bf16.mxu0 0
    %1815 = vmatpush2.bf16.msra.mxu0 0
    %1816 = vmatprep.subr.bf16.mxu0 0
    %1817 = vmatpush2.bf16.msra.mxu0 0
    %1818 = vmatprep.mubr.bf16.mxu0 0
    %1819 = vmatmul.mubr.bf16.gmra.mxu0 %v1784
    %v1820 = vpop.f32.mrf.mxu0
    %v1821 = vadd.f32 0.0, %v1820
    %v1822 = vpop.f32.mrf.mxu0
    %v1823 = vpop.f32.mrf.mxu0
    %v1824 = vadd.f32 0.0, %v1823
    %v1825 = vpop.f32.mrf.mxu0
    %1826 = vdwg.mxu0
    %v1827 = vcombine.low %v1492, %v1586
    %v1828 = vcombine.high %v1492, %v1586
    %v1830 = vunpack.c.l.s4 1983009808
    %v1831 = vunpack.c.0.s8 %v1830
    %v1832 = vlaneseq
    %v1833 = vshrl.u32 %v1832, 7
    %v1834 = vsub.s32 %v1831, %v1833
    %v1835 = vrot.slane %v1827, %v1834
    %v1837 = vunpack.c.l.s4 1983009808
    %v1838 = vunpack.c.0.s8 %v1837
    %v1839 = vlaneseq
    %v1840 = vshrl.u32 %v1839, 7
    %v1841 = vsub.s32 %v1838, %v1840
    %v1842 = vrot.slane %v1828, %v1841
    %v1843 = vcombine.low %v1539, %v1633
    %v1844 = vcombine.high %v1539, %v1633
    %v1846 = vunpack.c.l.s4 1983009808
    %v1847 = vunpack.c.0.s8 %v1846
    %v1848 = vlaneseq
    %v1849 = vshrl.u32 %v1848, 7
    %v1850 = vsub.s32 %v1847, %v1849
    %v1851 = vrot.slane %v1843, %v1850
    %v1853 = vunpack.c.l.s4 1983009808
    %v1854 = vunpack.c.0.s8 %v1853
    %v1855 = vlaneseq
    %v1856 = vshrl.u32 %v1855, 7
    %v1857 = vsub.s32 %v1854, %v1856
    %v1858 = vrot.slane %v1844, %v1857
    %v1859 = vcombine.low %v1835, %v1851
    %v1860 = vcombine.high %v1835, %v1851
    %v1862 = vunpack.c.l.s4 1934713408
    %v1863 = vunpack.c.0.s8 %v1862
    %v1864 = vlaneseq
    %v1865 = vshrl.u32 %v1864, 7
    %v1866 = vsub.s32 %v1863, %v1865
    %v1867 = vrot.slane %v1859, %v1866
    %v1869 = vunpack.c.l.s4 1934713408
    %v1870 = vunpack.c.0.s8 %v1869
    %v1871 = vlaneseq
    %v1872 = vshrl.u32 %v1871, 7
    %v1873 = vsub.s32 %v1870, %v1872
    %v1874 = vrot.slane %v1860, %v1873
    %v1875 = vcombine.low %v1842, %v1858
    %v1876 = vcombine.high %v1842, %v1858
    %v1878 = vunpack.c.l.s4 1934713408
    %v1879 = vunpack.c.0.s8 %v1878
    %v1880 = vlaneseq
    %v1881 = vshrl.u32 %v1880, 7
    %v1882 = vsub.s32 %v1879, %v1881
    %v1883 = vrot.slane %v1875, %v1882
    %v1885 = vunpack.c.l.s4 1934713408
    %v1886 = vunpack.c.0.s8 %v1885
    %v1887 = vlaneseq
    %v1888 = vshrl.u32 %v1887, 7
    %v1889 = vsub.s32 %v1886, %v1888
    %v1890 = vrot.slane %v1876, %v1889
    %v1891 = vcombine.high %v1867, 0.0
    %v1892 = vcombine.high %v1874, 0.0
    %v1893 = vcombine.high %v1883, 0.0
    %v1894 = vcombine.high %v1890, 0.0
    %v1895 = vcombine.low %v1495, %v1589
    %v1896 = vcombine.high %v1495, %v1589
    %v1898 = vunpack.c.l.s4 1983009808
    %v1899 = vunpack.c.0.s8 %v1898
    %v1900 = vlaneseq
    %v1901 = vshrl.u32 %v1900, 7
    %v1902 = vsub.s32 %v1899, %v1901
    %v1903 = vrot.slane %v1895, %v1902
    %v1905 = vunpack.c.l.s4 1983009808
    %v1906 = vunpack.c.0.s8 %v1905
    %v1907 = vlaneseq
    %v1908 = vshrl.u32 %v1907, 7
    %v1909 = vsub.s32 %v1906, %v1908
    %v1910 = vrot.slane %v1896, %v1909
    %v1911 = vcombine.low %v1542, %v1636
    %v1912 = vcombine.high %v1542, %v1636
    %v1914 = vunpack.c.l.s4 1983009808
    %v1915 = vunpack.c.0.s8 %v1914
    %v1916 = vlaneseq
    %v1917 = vshrl.u32 %v1916, 7
    %v1918 = vsub.s32 %v1915, %v1917
    %v1919 = vrot.slane %v1911, %v1918
    %v1921 = vunpack.c.l.s4 1983009808
    %v1922 = vunpack.c.0.s8 %v1921
    %v1923 = vlaneseq
    %v1924 = vshrl.u32 %v1923, 7
    %v1925 = vsub.s32 %v1922, %v1924
    %v1926 = vrot.slane %v1912, %v1925
    %v1927 = vcombine.low %v1903, %v1919
    %v1928 = vcombine.high %v1903, %v1919
    %v1930 = vunpack.c.l.s4 1934713408
    %v1931 = vunpack.c.0.s8 %v1930
    %v1932 = vlaneseq
    %v1933 = vshrl.u32 %v1932, 7
    %v1934 = vsub.s32 %v1931, %v1933
    %v1935 = vrot.slane %v1927, %v1934
    %v1937 = vunpack.c.l.s4 1934713408
    %v1938 = vunpack.c.0.s8 %v1937
    %v1939 = vlaneseq
    %v1940 = vshrl.u32 %v1939, 7
    %v1941 = vsub.s32 %v1938, %v1940
    %v1942 = vrot.slane %v1928, %v1941
    %v1943 = vcombine.low %v1910, %v1926
    %v1944 = vcombine.high %v1910, %v1926
    %v1946 = vunpack.c.l.s4 1934713408
    %v1947 = vunpack.c.0.s8 %v1946
    %v1948 = vlaneseq
    %v1949 = vshrl.u32 %v1948, 7
    %v1950 = vsub.s32 %v1947, %v1949
    %v1951 = vrot.slane %v1943, %v1950
    %v1953 = vunpack.c.l.s4 1934713408
    %v1954 = vunpack.c.0.s8 %v1953
    %v1955 = vlaneseq
    %v1956 = vshrl.u32 %v1955, 7
    %v1957 = vsub.s32 %v1954, %v1956
    %v1958 = vrot.slane %v1944, %v1957
    %v1959 = vcombine.high %v1935, 0.0
    %v1960 = vcombine.high %v1942, 0.0
    %v1961 = vcombine.high %v1951, 0.0
    %v1962 = vcombine.high %v1958, 0.0
    %v1963 = vcombine.low %v1680, %v1774
    %v1964 = vcombine.high %v1680, %v1774
    %v1966 = vunpack.c.l.s4 1983009808
    %v1967 = vunpack.c.0.s8 %v1966
    %v1968 = vlaneseq
    %v1969 = vshrl.u32 %v1968, 7
    %v1970 = vsub.s32 %v1967, %v1969
    %v1971 = vrot.slane %v1963, %v1970
    %v1973 = vunpack.c.l.s4 1983009808
    %v1974 = vunpack.c.0.s8 %v1973
    %v1975 = vlaneseq
    %v1976 = vshrl.u32 %v1975, 7
    %v1977 = vsub.s32 %v1974, %v1976
    %v1978 = vrot.slane %v1964, %v1977
    %v1979 = vcombine.low %v1727, %v1821
    %v1980 = vcombine.high %v1727, %v1821
    %v1982 = vunpack.c.l.s4 1983009808
    %v1983 = vunpack.c.0.s8 %v1982
    %v1984 = vlaneseq
    %v1985 = vshrl.u32 %v1984, 7
    %v1986 = vsub.s32 %v1983, %v1985
    %v1987 = vrot.slane %v1979, %v1986
    %v1989 = vunpack.c.l.s4 1983009808
    %v1990 = vunpack.c.0.s8 %v1989
    %v1991 = vlaneseq
    %v1992 = vshrl.u32 %v1991, 7
    %v1993 = vsub.s32 %v1990, %v1992
    %v1994 = vrot.slane %v1980, %v1993
    %v1995 = vcombine.low %v1971, %v1987
    %v1996 = vcombine.high %v1971, %v1987
    %v1998 = vunpack.c.l.s4 1934713408
    %v1999 = vunpack.c.0.s8 %v1998
    %v2000 = vlaneseq
    %v2001 = vshrl.u32 %v2000, 7
    %v2002 = vsub.s32 %v1999, %v2001
    %v2003 = vrot.slane %v1995, %v2002
    %v2005 = vunpack.c.l.s4 1934713408
    %v2006 = vunpack.c.0.s8 %v2005
    %v2007 = vlaneseq
    %v2008 = vshrl.u32 %v2007, 7
    %v2009 = vsub.s32 %v2006, %v2008
    %v2010 = vrot.slane %v1996, %v2009
    %v2011 = vcombine.low %v1978, %v1994
    %v2012 = vcombine.high %v1978, %v1994
    %v2014 = vunpack.c.l.s4 1934713408
    %v2015 = vunpack.c.0.s8 %v2014
    %v2016 = vlaneseq
    %v2017 = vshrl.u32 %v2016, 7
    %v2018 = vsub.s32 %v2015, %v2017
    %v2019 = vrot.slane %v2011, %v2018
    %v2021 = vunpack.c.l.s4 1934713408
    %v2022 = vunpack.c.0.s8 %v2021
    %v2023 = vlaneseq
    %v2024 = vshrl.u32 %v2023, 7
    %v2025 = vsub.s32 %v2022, %v2024
    %v2026 = vrot.slane %v2012, %v2025
    %v2027 = vcombine.high %v2003, 0.0
    %v2028 = vcombine.high %v2010, 0.0
    %v2029 = vcombine.high %v2019, 0.0
    %v2030 = vcombine.high %v2026, 0.0
    %v2031 = vcombine.low %v1683, %v1777
    %v2032 = vcombine.high %v1683, %v1777
    %v2034 = vunpack.c.l.s4 1983009808
    %v2035 = vunpack.c.0.s8 %v2034
    %v2036 = vlaneseq
    %v2037 = vshrl.u32 %v2036, 7
    %v2038 = vsub.s32 %v2035, %v2037
    %v2039 = vrot.slane %v2031, %v2038
    %v2041 = vunpack.c.l.s4 1983009808
    %v2042 = vunpack.c.0.s8 %v2041
    %v2043 = vlaneseq
    %v2044 = vshrl.u32 %v2043, 7
    %v2045 = vsub.s32 %v2042, %v2044
    %v2046 = vrot.slane %v2032, %v2045
    %v2047 = vcombine.low %v1730, %v1824
    %v2048 = vcombine.high %v1730, %v1824
    %v2050 = vunpack.c.l.s4 1983009808
    %v2051 = vunpack.c.0.s8 %v2050
    %v2052 = vlaneseq
    %v2053 = vshrl.u32 %v2052, 7
    %v2054 = vsub.s32 %v2051, %v2053
    %v2055 = vrot.slane %v2047, %v2054
    %v2057 = vunpack.c.l.s4 1983009808
    %v2058 = vunpack.c.0.s8 %v2057
    %v2059 = vlaneseq
    %v2060 = vshrl.u32 %v2059, 7
    %v2061 = vsub.s32 %v2058, %v2060
    %v2062 = vrot.slane %v2048, %v2061
    %v2063 = vcombine.low %v2039, %v2055
    %v2064 = vcombine.high %v2039, %v2055
    %v2066 = vunpack.c.l.s4 1934713408
    %v2067 = vunpack.c.0.s8 %v2066
    %v2068 = vlaneseq
    %v2069 = vshrl.u32 %v2068, 7
    %v2070 = vsub.s32 %v2067, %v2069
    %v2071 = vrot.slane %v2063, %v2070
    %v2073 = vunpack.c.l.s4 1934713408
    %v2074 = vunpack.c.0.s8 %v2073
    %v2075 = vlaneseq
    %v2076 = vshrl.u32 %v2075, 7
    %v2077 = vsub.s32 %v2074, %v2076
    %v2078 = vrot.slane %v2064, %v2077
    %v2079 = vcombine.low %v2046, %v2062
    %v2080 = vcombine.high %v2046, %v2062
    %v2082 = vunpack.c.l.s4 1934713408
    %v2083 = vunpack.c.0.s8 %v2082
    %v2084 = vlaneseq
    %v2085 = vshrl.u32 %v2084, 7
    %v2086 = vsub.s32 %v2083, %v2085
    %v2087 = vrot.slane %v2079, %v2086
    %v2089 = vunpack.c.l.s4 1934713408
    %v2090 = vunpack.c.0.s8 %v2089
    %v2091 = vlaneseq
    %v2092 = vshrl.u32 %v2091, 7
    %v2093 = vsub.s32 %v2090, %v2092
    %v2094 = vrot.slane %v2080, %v2093
    %v2095 = vcombine.high %v2071, 0.0
    %v2096 = vcombine.high %v2078, 0.0
    %v2097 = vcombine.high %v2087, 0.0
    %v2098 = vcombine.high %v2094, 0.0
    %v2099 = vcombine.low %v1867, %v1874
    %v2101 = vunpack.c.l.s4 1983009808
    %v2102 = vunpack.c.0.s8 %v2101
    %v2103 = vlaneseq
    %v2104 = vshrl.u32 %v2103, 7
    %v2105 = vsub.s32 %v2102, %v2104
    %v2106 = vrot.slane %v2099, %v2105
    %v2107 = vcombine.low %v1891, %v1892
    %v2109 = vunpack.c.l.s4 1983009808
    %v2110 = vunpack.c.0.s8 %v2109
    %v2111 = vlaneseq
    %v2112 = vshrl.u32 %v2111, 7
    %v2113 = vsub.s32 %v2110, %v2112
    %v2114 = vrot.slane %v2107, %v2113
    %v2115 = vcombine.low %v1883, %v1890
    %v2117 = vunpack.c.l.s4 1983009808
    %v2118 = vunpack.c.0.s8 %v2117
    %v2119 = vlaneseq
    %v2120 = vshrl.u32 %v2119, 7
    %v2121 = vsub.s32 %v2118, %v2120
    %v2122 = vrot.slane %v2115, %v2121
    %v2123 = vcombine.low %v1893, %v1894
    %v2125 = vunpack.c.l.s4 1983009808
    %v2126 = vunpack.c.0.s8 %v2125
    %v2127 = vlaneseq
    %v2128 = vshrl.u32 %v2127, 7
    %v2129 = vsub.s32 %v2126, %v2128
    %v2130 = vrot.slane %v2123, %v2129
    %v2131 = vcombine.low %v2106, %v2114
    %v2132 = vcombine.high %v2106, %v2114
    %v2134 = vunpack.c.l.s4 1934713408
    %v2135 = vunpack.c.0.s8 %v2134
    %v2136 = vlaneseq
    %v2137 = vshrl.u32 %v2136, 7
    %v2138 = vsub.s32 %v2135, %v2137
    %v2139 = vrot.slane %v2131, %v2138
    %v2141 = vunpack.c.l.s4 1934713408
    %v2142 = vunpack.c.0.s8 %v2141
    %v2143 = vlaneseq
    %v2144 = vshrl.u32 %v2143, 7
    %v2145 = vsub.s32 %v2142, %v2144
    %v2146 = vrot.slane %v2132, %v2145
    %v2147 = vcombine.low %v2122, %v2130
    %v2148 = vcombine.high %v2122, %v2130
    %v2150 = vunpack.c.l.s4 1934713408
    %v2151 = vunpack.c.0.s8 %v2150
    %v2152 = vlaneseq
    %v2153 = vshrl.u32 %v2152, 7
    %v2154 = vsub.s32 %v2151, %v2153
    %v2155 = vrot.slane %v2147, %v2154
    %v2157 = vunpack.c.l.s4 1934713408
    %v2158 = vunpack.c.0.s8 %v2157
    %v2159 = vlaneseq
    %v2160 = vshrl.u32 %v2159, 7
    %v2161 = vsub.s32 %v2158, %v2160
    %v2162 = vrot.slane %v2148, %v2161
    %v2163 = vcombine.low %v2139, %v2155
    %v2164 = vcombine.high %v2139, %v2155
    %v2165 = vcombine.low %v2146, %v2162
    %v2166 = vcombine.high %v2146, %v2162
    %v2167 = vcombine.low %v1935, %v1942
    %v2169 = vunpack.c.l.s4 1983009808
    %v2170 = vunpack.c.0.s8 %v2169
    %v2171 = vlaneseq
    %v2172 = vshrl.u32 %v2171, 7
    %v2173 = vsub.s32 %v2170, %v2172
    %v2174 = vrot.slane %v2167, %v2173
    %v2175 = vcombine.low %v1959, %v1960
    %v2177 = vunpack.c.l.s4 1983009808
    %v2178 = vunpack.c.0.s8 %v2177
    %v2179 = vlaneseq
    %v2180 = vshrl.u32 %v2179, 7
    %v2181 = vsub.s32 %v2178, %v2180
    %v2182 = vrot.slane %v2175, %v2181
    %v2183 = vcombine.low %v1951, %v1958
    %v2185 = vunpack.c.l.s4 1983009808
    %v2186 = vunpack.c.0.s8 %v2185
    %v2187 = vlaneseq
    %v2188 = vshrl.u32 %v2187, 7
    %v2189 = vsub.s32 %v2186, %v2188
    %v2190 = vrot.slane %v2183, %v2189
    %v2191 = vcombine.low %v1961, %v1962
    %v2193 = vunpack.c.l.s4 1983009808
    %v2194 = vunpack.c.0.s8 %v2193
    %v2195 = vlaneseq
    %v2196 = vshrl.u32 %v2195, 7
    %v2197 = vsub.s32 %v2194, %v2196
    %v2198 = vrot.slane %v2191, %v2197
    %v2199 = vcombine.low %v2174, %v2182
    %v2200 = vcombine.high %v2174, %v2182
    %v2202 = vunpack.c.l.s4 1934713408
    %v2203 = vunpack.c.0.s8 %v2202
    %v2204 = vlaneseq
    %v2205 = vshrl.u32 %v2204, 7
    %v2206 = vsub.s32 %v2203, %v2205
    %v2207 = vrot.slane %v2199, %v2206
    %v2209 = vunpack.c.l.s4 1934713408
    %v2210 = vunpack.c.0.s8 %v2209
    %v2211 = vlaneseq
    %v2212 = vshrl.u32 %v2211, 7
    %v2213 = vsub.s32 %v2210, %v2212
    %v2214 = vrot.slane %v2200, %v2213
    %v2215 = vcombine.low %v2190, %v2198
    %v2216 = vcombine.high %v2190, %v2198
    %v2218 = vunpack.c.l.s4 1934713408
    %v2219 = vunpack.c.0.s8 %v2218
    %v2220 = vlaneseq
    %v2221 = vshrl.u32 %v2220, 7
    %v2222 = vsub.s32 %v2219, %v2221
    %v2223 = vrot.slane %v2215, %v2222
    %v2225 = vunpack.c.l.s4 1934713408
    %v2226 = vunpack.c.0.s8 %v2225
    %v2227 = vlaneseq
    %v2228 = vshrl.u32 %v2227, 7
    %v2229 = vsub.s32 %v2226, %v2228
    %v2230 = vrot.slane %v2216, %v2229
    %v2231 = vcombine.low %v2207, %v2223
    %v2232 = vcombine.high %v2207, %v2223
    %v2233 = vcombine.low %v2214, %v2230
    %v2234 = vcombine.high %v2214, %v2230
    %v2235 = vcombine.low %v2003, %v2010
    %v2237 = vunpack.c.l.s4 1983009808
    %v2238 = vunpack.c.0.s8 %v2237
    %v2239 = vlaneseq
    %v2240 = vshrl.u32 %v2239, 7
    %v2241 = vsub.s32 %v2238, %v2240
    %v2242 = vrot.slane %v2235, %v2241
    %v2243 = vcombine.low %v2027, %v2028
    %v2245 = vunpack.c.l.s4 1983009808
    %v2246 = vunpack.c.0.s8 %v2245
    %v2247 = vlaneseq
    %v2248 = vshrl.u32 %v2247, 7
    %v2249 = vsub.s32 %v2246, %v2248
    %v2250 = vrot.slane %v2243, %v2249
    %v2251 = vcombine.low %v2019, %v2026
    %v2253 = vunpack.c.l.s4 1983009808
    %v2254 = vunpack.c.0.s8 %v2253
    %v2255 = vlaneseq
    %v2256 = vshrl.u32 %v2255, 7
    %v2257 = vsub.s32 %v2254, %v2256
    %v2258 = vrot.slane %v2251, %v2257
    %v2259 = vcombine.low %v2029, %v2030
    %v2261 = vunpack.c.l.s4 1983009808
    %v2262 = vunpack.c.0.s8 %v2261
    %v2263 = vlaneseq
    %v2264 = vshrl.u32 %v2263, 7
    %v2265 = vsub.s32 %v2262, %v2264
    %v2266 = vrot.slane %v2259, %v2265
    %v2267 = vcombine.low %v2242, %v2250
    %v2268 = vcombine.high %v2242, %v2250
    %v2270 = vunpack.c.l.s4 1934713408
    %v2271 = vunpack.c.0.s8 %v2270
    %v2272 = vlaneseq
    %v2273 = vshrl.u32 %v2272, 7
    %v2274 = vsub.s32 %v2271, %v2273
    %v2275 = vrot.slane %v2267, %v2274
    %v2277 = vunpack.c.l.s4 1934713408
    %v2278 = vunpack.c.0.s8 %v2277
    %v2279 = vlaneseq
    %v2280 = vshrl.u32 %v2279, 7
    %v2281 = vsub.s32 %v2278, %v2280
    %v2282 = vrot.slane %v2268, %v2281
    %v2283 = vcombine.low %v2258, %v2266
    %v2284 = vcombine.high %v2258, %v2266
    %v2286 = vunpack.c.l.s4 1934713408
    %v2287 = vunpack.c.0.s8 %v2286
    %v2288 = vlaneseq
    %v2289 = vshrl.u32 %v2288, 7
    %v2290 = vsub.s32 %v2287, %v2289
    %v2291 = vrot.slane %v2283, %v2290
    %v2293 = vunpack.c.l.s4 1934713408
    %v2294 = vunpack.c.0.s8 %v2293
    %v2295 = vlaneseq
    %v2296 = vshrl.u32 %v2295, 7
    %v2297 = vsub.s32 %v2294, %v2296
    %v2298 = vrot.slane %v2284, %v2297
    %v2299 = vcombine.low %v2275, %v2291
    %v2300 = vcombine.high %v2275, %v2291
    %v2301 = vcombine.low %v2282, %v2298
    %v2302 = vcombine.high %v2282, %v2298
    %v2303 = vcombine.low %v2071, %v2078
    %v2305 = vunpack.c.l.s4 1983009808
    %v2306 = vunpack.c.0.s8 %v2305
    %v2307 = vlaneseq
    %v2308 = vshrl.u32 %v2307, 7
    %v2309 = vsub.s32 %v2306, %v2308
    %v2310 = vrot.slane %v2303, %v2309
    %v2311 = vcombine.low %v2095, %v2096
    %v2313 = vunpack.c.l.s4 1983009808
    %v2314 = vunpack.c.0.s8 %v2313
    %v2315 = vlaneseq
    %v2316 = vshrl.u32 %v2315, 7
    %v2317 = vsub.s32 %v2314, %v2316
    %v2318 = vrot.slane %v2311, %v2317
    %v2319 = vcombine.low %v2087, %v2094
    %v2321 = vunpack.c.l.s4 1983009808
    %v2322 = vunpack.c.0.s8 %v2321
    %v2323 = vlaneseq
    %v2324 = vshrl.u32 %v2323, 7
    %v2325 = vsub.s32 %v2322, %v2324
    %v2326 = vrot.slane %v2319, %v2325
    %v2327 = vcombine.low %v2097, %v2098
    %v2329 = vunpack.c.l.s4 1983009808
    %v2330 = vunpack.c.0.s8 %v2329
    %v2331 = vlaneseq
    %v2332 = vshrl.u32 %v2331, 7
    %v2333 = vsub.s32 %v2330, %v2332
    %v2334 = vrot.slane %v2327, %v2333
    %v2335 = vcombine.low %v2310, %v2318
    %v2336 = vcombine.high %v2310, %v2318
    %v2338 = vunpack.c.l.s4 1934713408
    %v2339 = vunpack.c.0.s8 %v2338
    %v2340 = vlaneseq
    %v2341 = vshrl.u32 %v2340, 7
    %v2342 = vsub.s32 %v2339, %v2341
    %v2343 = vrot.slane %v2335, %v2342
    %v2345 = vunpack.c.l.s4 1934713408
    %v2346 = vunpack.c.0.s8 %v2345
    %v2347 = vlaneseq
    %v2348 = vshrl.u32 %v2347, 7
    %v2349 = vsub.s32 %v2346, %v2348
    %v2350 = vrot.slane %v2336, %v2349
    %v2351 = vcombine.low %v2326, %v2334
    %v2352 = vcombine.high %v2326, %v2334
    %v2354 = vunpack.c.l.s4 1934713408
    %v2355 = vunpack.c.0.s8 %v2354
    %v2356 = vlaneseq
    %v2357 = vshrl.u32 %v2356, 7
    %v2358 = vsub.s32 %v2355, %v2357
    %v2359 = vrot.slane %v2351, %v2358
    %v2361 = vunpack.c.l.s4 1934713408
    %v2362 = vunpack.c.0.s8 %v2361
    %v2363 = vlaneseq
    %v2364 = vshrl.u32 %v2363, 7
    %v2365 = vsub.s32 %v2362, %v2364
    %v2366 = vrot.slane %v2352, %v2365
    %v2367 = vcombine.low %v2343, %v2359
    %v2368 = vcombine.high %v2343, %v2359
    %v2369 = vcombine.low %v2350, %v2366
    %v2370 = vcombine.high %v2350, %v2366
    %2375 = vrot.lane.b32.xlu0 %v2164, 16
    %v2376 = vpop.permute.xlu0 %2375
    %2377 = vrot.lane.b32.xlu0 %v2232, 16
    %v2378 = vpop.permute.xlu0 %2377
    %2379 = vrot.lane.b32.xlu0 %v2300, 16
    %v2380 = vpop.permute.xlu0 %2379
    %2381 = vrot.lane.b32.xlu0 %v2368, 16
    %v2382 = vpop.permute.xlu0 %2381
    %2391 = vrot.lane.b32.xlu0 %v2165, 32
    %v2392 = vpop.permute.xlu0 %2391
    %2393 = vrot.lane.b32.xlu0 %v2233, 32
    %v2394 = vpop.permute.xlu0 %2393
    %2395 = vrot.lane.b32.xlu0 %v2301, 32
    %v2396 = vpop.permute.xlu0 %2395
    %2397 = vrot.lane.b32.xlu0 %v2369, 32
    %v2398 = vpop.permute.xlu0 %2397
    %2407 = vrot.lane.b32.xlu0 %v2166, 48
    %v2408 = vpop.permute.xlu0 %2407
    %2409 = vrot.lane.b32.xlu0 %v2234, 48
    %v2410 = vpop.permute.xlu0 %2409
    %2411 = vrot.lane.b32.xlu0 %v2302, 48
    %v2412 = vpop.permute.xlu0 %2411
    %2413 = vrot.lane.b32.xlu0 %v2370, 48
    %v2414 = vpop.permute.xlu0 %2413
    %v2419 = vsel %vm869, %v2163, %v2376
    %v2420 = vsel %vm869, %v2231, %v2378
    %v2421 = vsel %vm869, %v2299, %v2380
    %v2422 = vsel %vm869, %v2367, %v2382
    %v2423 = vsel %vm293, %v2419, %v2392
    %v2424 = vsel %vm293, %v2420, %v2394
    %v2425 = vsel %vm293, %v2421, %v2396
    %v2426 = vsel %vm293, %v2422, %v2398
    %vm2427 = vcmask 392192
    %v2428 = vsel %vm2427, %v2423, %v2408
    %v2429 = vsel %vm2427, %v2424, %v2410
    %v2430 = vsel %vm2427, %v2425, %v2412
    %v2431 = vsel %vm2427, %v2426, %v2414
    %v2432 = vpack.c.bf16 %v2429, %v2428
    %v2433 = vpack.c.bf16 %v2431, %v2430
    %v2434 = vld [vmem:[#allocation2] sm:$0xf]
    %v2435 = vld [vmem:[#allocation2 + $0x4] sm:$0xf]
    %v2436 = vld [vmem:[#allocation2 + $0x8] sm:$0xf]
    %v2437 = vld [vmem:[#allocation2 + $0xc] sm:$0xf]
    %v2438 = vld [vmem:[#allocation2 + $0x10] sm:$0xf]
    %v2439 = vld [vmem:[#allocation2 + $0x14] sm:$0xf]
    %v2440 = vld [vmem:[#allocation2 + $0x18] sm:$0xf]
    %v2441 = vld [vmem:[#allocation2 + $0x1c] sm:$0xf]
    %v2442 = vlaneseq
    %v2443 = vshrl.u32 %v2442, 7
    %v2444 = vsub.s32 4, %v2443
    %v2445 = vrot.slane %v68, %v2444
    %v2454 = vunpack.c.l.b16 %v2434
    %v2455 = vunpack.c.l.b16 %v2435
    %v2456 = vunpack.c.l.b16 %v2436
    %v2457 = vunpack.c.l.b16 %v2437
    %v2458 = vunpack.c.l.b16 %v2438
    %v2459 = vunpack.c.l.b16 %v2439
    %v2460 = vunpack.c.l.b16 %v2440
    %v2461 = vunpack.c.l.b16 %v2441
    %v2462 = vpack.c.b16 %v2455, %v2454
    %v2463 = vpack.c.b16 %v2457, %v2456
    %v2464 = vpack.c.b16 %v2459, %v2458
    %v2465 = vpack.c.b16 %v2461, %v2460
    %v2471 = vsel %vm70, %v2432, 0
    %v2474 = vsel %vm70, %v2433, 0
    %2476 = vmatprep.subr.bf16.mxu0 0
    %2477 = vmatpush1.bf16.msra.mxu0 0
    %2478 = vmatprep.subr.bf16.mxu0 0
    %2479 = vmatpush1.bf16.msra.mxu0 0
    %2480 = vmatprep.subr.bf16.mxu0 0
    %2481 = vmatpush1.bf16.msra.mxu0 0
    %2482 = vmatprep.subr.bf16.mxu0 0
    %2483 = vmatpush1.bf16.msra.mxu0 0
    %2484 = vmatprep.subr.bf16.mxu0 0
    %2485 = vmatpush1.bf16.msra.mxu0 %v2465
    %2486 = vmatprep.subr.bf16.mxu0 0
    %2487 = vmatpush1.bf16.msra.mxu0 %v2464
    %2488 = vmatprep.subr.bf16.mxu0 0
    %2489 = vmatpush1.bf16.msra.mxu0 %v2463
    %2490 = vmatprep.subr.bf16.mxu0 0
    %2491 = vmatpush1.bf16.msra.mxu0 %v2462
    %2492 = vmatprep.subr.bf16.mxu0 0
    %2493 = vmatpush2.bf16.msra.mxu0 0
    %2494 = vmatprep.subr.bf16.mxu0 0
    %2495 = vmatpush2.bf16.msra.mxu0 0
    %2496 = vmatprep.subr.bf16.mxu0 0
    %2497 = vmatpush2.bf16.msra.mxu0 0
    %2498 = vmatprep.subr.bf16.mxu0 0
    %2499 = vmatpush2.bf16.msra.mxu0 0
    %2500 = vmatprep.subr.bf16.mxu0 0
    %2501 = vmatpush2.bf16.msra.mxu0 0
    %2502 = vmatprep.subr.bf16.mxu0 0
    %2503 = vmatpush2.bf16.msra.mxu0 0
    %2504 = vmatprep.subr.bf16.mxu0 0
    %2505 = vmatpush2.bf16.msra.mxu0 0
    %2506 = vmatprep.subr.bf16.mxu0 0
    %2507 = vmatpush2.bf16.msra.mxu0 0
    %2508 = vmatprep.mubr.bf16.mxu0 0
    %2509 = vmatmul.mubr.bf16.gmra.mxu0 %v2471
    %v2510 = vpop.f32.mrf.mxu0
    %v2511 = vadd.f32 %v2445, %v2510
    %v2512 = vpop.f32.mrf.mxu0
    %v2513 = vpop.f32.mrf.mxu0
    %v2514 = vadd.f32 %v2445, %v2513
    %v2515 = vpop.f32.mrf.mxu0
    %2516 = vmatprep.mubr.bf16.mxu0 0
    %2517 = vmatmul.mubr.bf16.gmra.mxu0 %v2474
    %v2518 = vpop.f32.mrf.mxu0
    %v2519 = vadd.f32 %v2445, %v2518
    %v2520 = vpop.f32.mrf.mxu0
    %v2521 = vpop.f32.mrf.mxu0
    %v2522 = vadd.f32 %v2445, %v2521
    %v2523 = vpop.f32.mrf.mxu0
    %2524 = vdwg.mxu0
    %v2525 = vadd.f32 %v64, %v2511
    %v2526 = vadd.f32 %v65, %v2514
    %v2527 = vadd.f32 %v66, %v2519
    %v2528 = vadd.f32 %v67, %v2522
    %v2529 = vsel %vm70, %v2525, 0.0
    %2530 = vadd.xlane.f32.xlu0 %v2529
    %v2531 = vpop.xlane.xlu0 %2530
    %v2532 = vsel %vm70, %v2526, 0.0
    %2533 = vadd.xlane.f32.xlu0 %v2532
    %v2534 = vpop.xlane.xlu0 %2533
    %v2535 = vsel %vm70, %v2527, 0.0
    %2536 = vadd.xlane.f32.xlu0 %v2535
    %v2537 = vpop.xlane.xlu0 %2536
    %v2538 = vsel %vm70, %v2528, 0.0
    %2539 = vadd.xlane.f32.xlu0 %v2538
    %v2540 = vpop.xlane.xlu0 %2539
    %v2541 = vmul.f32 %v2531, %v83
    %v2542 = vmul.f32 %v2534, %v83
    %v2543 = vmul.f32 %v2537, %v83
    %v2544 = vmul.f32 %v2540, %v83
    %v2545 = vsub.f32 %v2525, %v2541
    %v2546 = vsub.f32 %v2526, %v2542
    %v2547 = vsub.f32 %v2527, %v2543
    %v2548 = vsub.f32 %v2528, %v2544
    %v2549 = vmul.f32 %v2545, %v2545
    %v2550 = vmul.f32 %v2546, %v2546
    %v2551 = vmul.f32 %v2547, %v2547
    %v2552 = vmul.f32 %v2548, %v2548
    %v2553 = vsel %vm70, %v2549, 0.0
    %2554 = vadd.xlane.f32.xlu0 %v2553
    %v2555 = vpop.xlane.xlu0 %2554
    %v2556 = vsel %vm70, %v2550, 0.0
    %2557 = vadd.xlane.f32.xlu0 %v2556
    %v2558 = vpop.xlane.xlu0 %2557
    %v2559 = vsel %vm70, %v2551, 0.0
    %2560 = vadd.xlane.f32.xlu0 %v2559
    %v2561 = vpop.xlane.xlu0 %2560
    %v2562 = vsel %vm70, %v2552, 0.0
    %2563 = vadd.xlane.f32.xlu0 %v2562
    %v2564 = vpop.xlane.xlu0 %2563
    %v2565 = vmul.f32 %v2555, %v83
    %v2566 = vmul.f32 %v2558, %v83
    %v2567 = vmul.f32 %v2561, %v83
    %v2568 = vmul.f32 %v2564, %v83
    %v2569 = vadd.f32 %v2565, 1e-06
    %v2570 = vadd.f32 %v2566, 1e-06
    %v2571 = vadd.f32 %v2567, 1e-06
    %v2572 = vadd.f32 %v2568, 1e-06
    %v2573 = vrsqrt.pop %v2569
    %v2574 = vrsqrt.pop %v2570
    %v2575 = vrsqrt.pop %v2571
    %v2576 = vrsqrt.pop %v2572
    %v2577 = vmul.f32 %v2545, %v2573
    %v2578 = vmul.f32 %v2546, %v2574
    %v2579 = vmul.f32 %v2547, %v2575
    %v2580 = vmul.f32 %v2548, %v2576
    %v2581 = vlaneseq
    %v2582 = vshrl.u32 %v2581, 7
    %v2583 = vsub.s32 2, %v2582
    %v2584 = vrot.slane %v68, %v2583
    %v2585 = vmul.f32 %v2577, %v2584
    %v2586 = vmul.f32 %v2578, %v2584
    %v2587 = vmul.f32 %v2579, %v2584
    %v2588 = vmul.f32 %v2580, %v2584
    %v2589 = vlaneseq
    %v2590 = vshrl.u32 %v2589, 7
    %v2591 = vsub.s32 3, %v2590
    %v2592 = vrot.slane %v68, %v2591
    %v2593 = vadd.f32 %v2585, %v2592
    %v2594 = vadd.f32 %v2586, %v2592
    %v2595 = vadd.f32 %v2587, %v2592
    %v2596 = vadd.f32 %v2588, %v2592
    %v2597 = vpack.c.bf16 %v2594, %v2593
    %v2598 = vpack.c.bf16 %v2596, %v2595
    %v2599 = vld [vmem:[#allocation5] sm:$0xf]
    %v2600 = vld [vmem:[#allocation5 + $0x4] sm:$0xf]
    %v2601 = vld [vmem:[#allocation5 + $0x8] sm:$0xf]
    %v2602 = vld [vmem:[#allocation5 + $0xc] sm:$0xf]
    %v2603 = vld [vmem:[#allocation5 + $0x10] sm:$0xf]
    %v2604 = vld [vmem:[#allocation5 + $0x14] sm:$0xf]
    %v2605 = vld [vmem:[#allocation5 + $0x18] sm:$0xf]
    %v2606 = vld [vmem:[#allocation5 + $0x1c] sm:$0xf]
    %v2607 = vlaneseq
    %v2608 = vshrl.u32 %v2607, 7
    %v2609 = vsub.s32 6, %v2608
    %v2610 = vrot.slane %v68, %v2609
    %v2619 = vunpack.c.l.b16 %v2599
    %v2620 = vunpack.c.l.b16 %v2600
    %v2621 = vunpack.c.l.b16 %v2601
    %v2622 = vunpack.c.l.b16 %v2602
    %v2623 = vunpack.c.l.b16 %v2603
    %v2624 = vunpack.c.l.b16 %v2604
    %v2625 = vunpack.c.l.b16 %v2605
    %v2626 = vunpack.c.l.b16 %v2606
    %v2627 = vpack.c.b16 %v2620, %v2619
    %v2628 = vpack.c.b16 %v2622, %v2621
    %v2629 = vpack.c.b16 %v2624, %v2623
    %v2630 = vpack.c.b16 %v2626, %v2625
    %v2636 = vsel %vm70, %v2597, 0
    %v2639 = vsel %vm70, %v2598, 0
    %2641 = vmatprep.subr.bf16.mxu0 0
    %2642 = vmatpush1.bf16.msra.mxu0 0
    %2643 = vmatprep.subr.bf16.mxu0 0
    %2644 = vmatpush1.bf16.msra.mxu0 0
    %2645 = vmatprep.subr.bf16.mxu0 0
    %2646 = vmatpush1.bf16.msra.mxu0 0
    %2647 = vmatprep.subr.bf16.mxu0 0
    %2648 = vmatpush1.bf16.msra.mxu0 0
    %2649 = vmatprep.subr.bf16.mxu0 0
    %2650 = vmatpush1.bf16.msra.mxu0 %v2630
    %2651 = vmatprep.subr.bf16.mxu0 0
    %2652 = vmatpush1.bf16.msra.mxu0 %v2629
    %2653 = vmatprep.subr.bf16.mxu0 0
    %2654 = vmatpush1.bf16.msra.mxu0 %v2628
    %2655 = vmatprep.subr.bf16.mxu0 0
    %2656 = vmatpush1.bf16.msra.mxu0 %v2627
    %2657 = vmatprep.subr.bf16.mxu0 0
    %2658 = vmatpush2.bf16.msra.mxu0 0
    %2659 = vmatprep.subr.bf16.mxu0 0
    %2660 = vmatpush2.bf16.msra.mxu0 0
    %2661 = vmatprep.subr.bf16.mxu0 0
    %2662 = vmatpush2.bf16.msra.mxu0 0
    %2663 = vmatprep.subr.bf16.mxu0 0
    %2664 = vmatpush2.bf16.msra.mxu0 0
    %2665 = vmatprep.subr.bf16.mxu0 0
    %2666 = vmatpush2.bf16.msra.mxu0 0
    %2667 = vmatprep.subr.bf16.mxu0 0
    %2668 = vmatpush2.bf16.msra.mxu0 0
    %2669 = vmatprep.subr.bf16.mxu0 0
    %2670 = vmatpush2.bf16.msra.mxu0 0
    %2671 = vmatprep.subr.bf16.mxu0 0
    %2672 = vmatpush2.bf16.msra.mxu0 0
    %2673 = vmatprep.mubr.bf16.mxu0 0
    %2674 = vmatmul.mubr.bf16.gmra.mxu0 %v2636
    %v2675 = vpop.f32.mrf.mxu0
    %v2676 = vadd.f32 %v2610, %v2675
    %v2677 = vpop.f32.mrf.mxu0
    %v2678 = vpop.f32.mrf.mxu0
    %v2679 = vadd.f32 %v2610, %v2678
    %v2680 = vpop.f32.mrf.mxu0
    %2681 = vmatprep.mubr.bf16.mxu0 0
    %2682 = vmatmul.mubr.bf16.gmra.mxu0 %v2639
    %v2683 = vpop.f32.mrf.mxu0
    %v2684 = vadd.f32 %v2610, %v2683
    %v2685 = vpop.f32.mrf.mxu0
    %v2686 = vpop.f32.mrf.mxu0
    %v2687 = vadd.f32 %v2610, %v2686
    %v2688 = vpop.f32.mrf.mxu0
    %2689 = vdwg.mxu0
    %v2690 = vmul.f32 %v2676, 0.5
    %v2691 = vmul.f32 %v2679, 0.5
    %v2692 = vmul.f32 %v2684, 0.5
    %v2693 = vmul.f32 %v2687, 0.5
    %v2694 = vmul.f32 %v2676, 0.044715
    %v2695 = vmul.f32 %v2679, 0.044715
    %v2696 = vmul.f32 %v2684, 0.044715
    %v2697 = vmul.f32 %v2687, 0.044715
    %v2698 = vmul.f32 %v2694, %v2676
    %v2699 = vmul.f32 %v2695, %v2679
    %v2700 = vmul.f32 %v2696, %v2684
    %v2701 = vmul.f32 %v2697, %v2687
    %v2702 = vmul.f32 %v2698, %v2676
    %v2703 = vmul.f32 %v2699, %v2679
    %v2704 = vmul.f32 %v2700, %v2684
    %v2705 = vmul.f32 %v2701, %v2687
    %v2706 = vadd.f32 %v2676, %v2702
    %v2707 = vadd.f32 %v2679, %v2703
    %v2708 = vadd.f32 %v2684, %v2704
    %v2709 = vadd.f32 %v2687, %v2705
    %v2710 = vmul.f32 %v2706, 0.7978846
    %v2711 = vmul.f32 %v2707, 0.7978846
    %v2712 = vmul.f32 %v2708, 0.7978846
    %v2713 = vmul.f32 %v2709, 0.7978846
    %v2714 = vtanh.pop %v2710
    %v2715 = vtanh.pop %v2711
    %v2716 = vtanh.pop %v2712
    %v2717 = vtanh.pop %v2713
    %v2718 = vadd.f32 %v2714, 1.0
    %v2719 = vadd.f32 %v2715, 1.0
    %v2720 = vadd.f32 %v2716, 1.0
    %v2721 = vadd.f32 %v2717, 1.0
    %v2722 = vmul.f32 %v2690, %v2718
    %v2723 = vmul.f32 %v2691, %v2719
    %v2724 = vmul.f32 %v2692, %v2720
    %v2725 = vmul.f32 %v2693, %v2721
    %v2726 = vpack.c.bf16 %v2723, %v2722
    %v2727 = vpack.c.bf16 %v2725, %v2724
    %v2728 = vld [vmem:[%s4] sm:$0xf]
    %v2729 = vld [vmem:[%s4 + $0x4] sm:$0xf]
    %v2730 = vld [vmem:[%s4 + $0x8] sm:$0xf]
    %v2731 = vld [vmem:[%s4 + $0xc] sm:$0xf]
    %v2732 = vld [vmem:[%s4 + $0x10] sm:$0xf]
    %v2733 = vld [vmem:[%s4 + $0x14] sm:$0xf]
    %v2734 = vld [vmem:[%s4 + $0x18] sm:$0xf]
    %v2735 = vld [vmem:[%s4 + $0x1c] sm:$0xf]
    %v2736 = vld [vmem:[%s4 + $0x20] sm:$0xf]
    %v2737 = vld [vmem:[%s4 + $0x24] sm:$0xf]
    %v2738 = vld [vmem:[%s4 + $0x28] sm:$0xf]
    %v2739 = vld [vmem:[%s4 + $0x2c] sm:$0xf]
    %v2740 = vld [vmem:[%s4 + $0x30] sm:$0xf]
    %v2741 = vld [vmem:[%s4 + $0x34] sm:$0xf]
    %v2742 = vld [vmem:[%s4 + $0x38] sm:$0xf]
    %v2743 = vld [vmem:[%s4 + $0x3c] sm:$0xf]
    %v2744 = vlaneseq
    %v2745 = vshrl.u32 %v2744, 7
    %v2746 = vsub.s32 5, %v2745
    %v2747 = vrot.slane %v68, %v2746
    %v2764 = vunpack.c.l.b16 %v2728
    %v2765 = vunpack.c.l.b16 %v2729
    %v2766 = vunpack.c.l.b16 %v2730
    %v2767 = vunpack.c.l.b16 %v2731
    %v2768 = vunpack.c.l.b16 %v2732
    %v2769 = vunpack.c.l.b16 %v2733
    %v2770 = vunpack.c.l.b16 %v2734
    %v2771 = vunpack.c.l.b16 %v2735
    %v2772 = vunpack.c.l.b16 %v2736
    %v2773 = vunpack.c.l.b16 %v2737
    %v2774 = vunpack.c.l.b16 %v2738
    %v2775 = vunpack.c.l.b16 %v2739
    %v2776 = vunpack.c.l.b16 %v2740
    %v2777 = vunpack.c.l.b16 %v2741
    %v2778 = vunpack.c.l.b16 %v2742
    %v2779 = vunpack.c.l.b16 %v2743
    %v2780 = vpack.c.b16 %v2765, %v2764
    %v2781 = vpack.c.b16 %v2767, %v2766
    %v2782 = vpack.c.b16 %v2769, %v2768
    %v2783 = vpack.c.b16 %v2771, %v2770
    %v2784 = vpack.c.b16 %v2773, %v2772
    %v2785 = vpack.c.b16 %v2775, %v2774
    %v2786 = vpack.c.b16 %v2777, %v2776
    %v2787 = vpack.c.b16 %v2779, %v2778
    %2796 = vmatprep.subr.bf16.mxu0 0
    %2797 = vmatpush1.bf16.msra.mxu0 %v2787
    %2798 = vmatprep.subr.bf16.mxu0 0
    %2799 = vmatpush1.bf16.msra.mxu0 %v2786
    %2800 = vmatprep.subr.bf16.mxu0 0
    %2801 = vmatpush1.bf16.msra.mxu0 %v2785
    %2802 = vmatprep.subr.bf16.mxu0 0
    %2803 = vmatpush1.bf16.msra.mxu0 %v2784
    %2804 = vmatprep.subr.bf16.mxu0 0
    %2805 = vmatpush1.bf16.msra.mxu0 %v2783
    %2806 = vmatprep.subr.bf16.mxu0 0
    %2807 = vmatpush1.bf16.msra.mxu0 %v2782
    %2808 = vmatprep.subr.bf16.mxu0 0
    %2809 = vmatpush1.bf16.msra.mxu0 %v2781
    %2810 = vmatprep.subr.bf16.mxu0 0
    %2811 = vmatpush1.bf16.msra.mxu0 %v2780
    %2812 = vmatprep.subr.bf16.mxu0 0
    %2813 = vmatpush2.bf16.msra.mxu0 0
    %2814 = vmatprep.subr.bf16.mxu0 0
    %2815 = vmatpush2.bf16.msra.mxu0 0
    %2816 = vmatprep.subr.bf16.mxu0 0
    %2817 = vmatpush2.bf16.msra.mxu0 0
    %2818 = vmatprep.subr.bf16.mxu0 0
    %2819 = vmatpush2.bf16.msra.mxu0 0
    %2820 = vmatprep.subr.bf16.mxu0 0
    %2821 = vmatpush2.bf16.msra.mxu0 0
    %2822 = vmatprep.subr.bf16.mxu0 0
    %2823 = vmatpush2.bf16.msra.mxu0 0
    %2824 = vmatprep.subr.bf16.mxu0 0
    %2825 = vmatpush2.bf16.msra.mxu0 0
    %2826 = vmatprep.subr.bf16.mxu0 0
    %2827 = vmatpush2.bf16.msra.mxu0 0
    %2828 = vmatprep.mubr.bf16.mxu0 0
    %2829 = vmatmul.mubr.bf16.gmra.mxu0 %v2726
    %v2830 = vpop.f32.mrf.mxu0
    %v2831 = vadd.f32 %v2747, %v2830
    %v2832 = vpop.f32.mrf.mxu0
    %v2833 = vpop.f32.mrf.mxu0
    %v2834 = vadd.f32 %v2747, %v2833
    %v2835 = vpop.f32.mrf.mxu0
    %2836 = vmatprep.mubr.bf16.mxu0 0
    %2837 = vmatmul.mubr.bf16.gmra.mxu0 %v2727
    %v2838 = vpop.f32.mrf.mxu0
    %v2839 = vadd.f32 %v2747, %v2838
    %v2840 = vpop.f32.mrf.mxu0
    %v2841 = vpop.f32.mrf.mxu0
    %v2842 = vadd.f32 %v2747, %v2841
    %v2843 = vpop.f32.mrf.mxu0
    %2844 = vdwg.mxu0
    %v2845 = vadd.f32 %v2525, %v2831
    %v2846 = vadd.f32 %v2526, %v2834
    %v2847 = vadd.f32 %v2527, %v2839
    %v2848 = vadd.f32 %v2528, %v2842
    %2849 = vst.msk [vmem:[#allocation8] sm:$0xff] %vm70, %v2845
    %2850 = vst.msk [vmem:[#allocation8 + $0x8] sm:$0xff] %vm70, %v2846
    %2851 = vst.msk [vmem:[#allocation8 + $0x10] sm:$0xff] %vm70, %v2847
    %2852 = vst.msk [vmem:[#allocation8 + $0x18] sm:$0xff] %vm70, %v2848
    // Predicated region
    $region38: #{siglip_encoder_layer.1} parent=1 // pred_check
      _
    $region39: #{siglip_encoder_layer.1} parent=1 // pred_check_branch
      %2854 = sbr.rel (0) target = $region41
    $region40: #{siglip_encoder_layer.1} parent=1 // pred_region
      %s2856 = ssub.s32 512, 512
      %2857 = vsyncadd [#allocation4], %s2856
      %s2858 = sshll.u32 [#allocation8], 4
      %s2859 = int_to_ptr.vmem [resolvable:$true] %s2858
      %2864 = dma.vmem_to_hbm [thread:$0]  %s2859, 512, %s6, [#allocation4], 128, 128, 8
    $region41: #{siglip_encoder_layer.1} parent=1 // pred_fallthru
      _
    // Predicated region
    $region42: #{siglip_encoder_layer.1} parent=1 // pred_check
      _
    $region43: #{siglip_encoder_layer.1} parent=1 // pred_check_branch
      %2866 = sbr.rel (0) target = $region45
    $region44: #{siglip_encoder_layer.1} parent=1 // pred_region
      %2867 = dma.done [#allocation4], 512
    $region45: #{siglip_encoder_layer.1} parent=1 // pred_fallthru
      _
    %2868 = vsyncpa [#allocation3], 1
    %2869 = vsyncpa [#allocation6], 1
    %2870 = vsyncpa [#allocation4], 1

</llo_original>
